<compile_context>
chip_gen: v7x
topology: tpu7x:2x2x1
jax: 0.10.0
libtpu: 0.0.40
codegen_flags: <defaults>
</compile_context>

<pallas_src>
import jax
import jax.numpy as jnp
import numpy as np
from jax.experimental import pallas as pl
from jax.experimental.pallas import tpu as pltpu

# Model dims fixed by the PyTorch module definition.
CIN, COUT, KW, W, H = 20, 64, 5, 20, 1
PAD = KW // 2
WPOOL = W // 2              # 10   (MaxPool (1,2) stride (1,2))
HID, NCLS = 16, 2
KC = KW * CIN               # 100  im2col contraction dim (no lane pad)


def seq_kernel(x_ref, wc_ref, bc_ref, w1_ref, b1_ref, w2_ref, b2_ref, o_ref):
    # x_ref : (W, tb, KC)        bf16 im2col input, lane index = k*CIN + c
    # wc_ref: (KC, COUT)         bf16 conv weight; bc_ref: (1, COUT) f32
    # w1_ref: (WPOOL, COUT, HID) bf16 fc1 weight;  b1_ref: (1, HID)  f32
    # w2_ref: (HID, NCLS) f32;   b2_ref: (1, NCLS) f32; o_ref: (tb, NCLS) f32
    tb = x_ref.shape[1]

    # Conv as ONE matmul over all W positions (pure leading-dim merge).
    x = x_ref[...].reshape(W * tb, KC)                               # bf16
    conv = jnp.dot(x, wc_ref[...], preferred_element_type=jnp.float32)
    conv = jnp.maximum(conv + bc_ref[...], 0.0)                      # bias + ReLU, once

    # MaxPool2d((1,2),(1,2)): pair adjacent positions via leading-dim reshape.
    pooled = jnp.max(conv.reshape(WPOOL, 2, tb, COUT), axis=1)       # (WPOOL, tb, COUT)
    pooled = pooled.astype(jnp.bfloat16)

    # Linear(640,16): accumulate 10 per-position (tb,64)@(64,16) dots in f32.
    acc = jnp.zeros((tb, HID), jnp.float32)
    for w in range(WPOOL):
        acc = acc + jnp.dot(pooled[w], w1_ref[w],
                            preferred_element_type=jnp.float32)
    z1 = jnp.maximum(acc + b1_ref[...], 0.0)

    # Linear(16,2) + Softmax over 2 classes, kept in f32.
    z2 = jnp.dot(z1, w2_ref[...], preferred_element_type=jnp.float32) + b2_ref[...]
    m = jnp.max(z2, axis=-1, keepdims=True)
    e = jnp.exp(z2 - m)
    o_ref[...] = e / jnp.sum(e, axis=-1, keepdims=True)


def seq_64x1_16(x_nchw, params, tb=512):
    """x_nchw: (N, 20, 1, 20) float32, params in PyTorch layouts. tb: batch tile."""
    Wc, bc, W1, b1, W2, b2 = params
    N = x_nchw.shape[0]

    # Batch tile: multiple of 16 (bf16 sublane packing keeps in-kernel reshapes
    # free), capped at 512 so double-buffered blocks fit v5e's scoped VMEM too.
    tb = max(16, min(int(tb), 512))
    tb = ((tb + 15) // 16) * 16
    tb = min(tb, ((N + 15) // 16) * 16)
    if pl.cdiv(N, tb) == 1 and N > 16:        # give v7x's 2nd TensorCore work
        tb = max(16, ((pl.cdiv(N, 2) + 15) // 16) * 16)
    npad = pl.cdiv(N, tb) * tb

    # --- Glue: layout transforms (plain JAX, bf16, single merged pad) ----------
    # im2col: X[w, n, k*CIN + c] = xpad[n, c, w + k]
    xpad = jnp.pad(x_nchw[:, :, 0, :].astype(jnp.bfloat16),
                   ((0, npad - N), (0, 0), (PAD, PAD)))               # (npad,CIN,W+4)
    cols = jnp.stack([xpad[:, :, k:k + W] for k in range(KW)], axis=1)  # (npad,KW,CIN,W)
    X = jnp.transpose(cols, (3, 0, 1, 2)).reshape(W, npad, KC)        # (W,npad,100)

    # Conv weight -> (KC, COUT) with row index k*CIN + c (matches im2col lanes).
    wc = jnp.transpose(Wc[:, :, 0, :], (2, 1, 0)).reshape(KC, COUT).astype(jnp.bfloat16)
    # torch Flatten index = c*10 + w  ->  fc1 weight as (WPOOL, COUT, HID).
    w1 = jnp.transpose(W1.reshape(HID, COUT, WPOOL), (2, 1, 0)).astype(jnp.bfloat16)
    w2 = W2.T.astype(jnp.float32)                                     # (HID, NCLS)
    bc2 = bc.reshape(1, COUT).astype(jnp.float32)
    b12 = b1.reshape(1, HID).astype(jnp.float32)
    b22 = b2.reshape(1, NCLS).astype(jnp.float32)

    out = pl.pallas_call(
        seq_kernel,
        out_shape=jax.ShapeDtypeStruct((npad, NCLS), jnp.float32),
        grid=(npad // tb,),
        in_specs=[
            pl.BlockSpec((W, tb, KC), lambda i: (0, i, 0)),           # per-tile input
            pl.BlockSpec((KC, COUT), lambda i: (0, 0)),               # conv weight
            pl.BlockSpec((1, COUT), lambda i: (0, 0)),                # conv bias
            pl.BlockSpec((WPOOL, COUT, HID), lambda i: (0, 0, 0)),    # fc1 weight
            pl.BlockSpec((1, HID), lambda i: (0, 0)),                 # fc1 bias
            pl.BlockSpec((HID, NCLS), lambda i: (0, 0)),              # fc2 weight
            pl.BlockSpec((1, NCLS), lambda i: (0, 0)),                # fc2 bias
        ],
        out_specs=pl.BlockSpec((tb, NCLS), lambda i: (i, 0)),         # per-tile output
        compiler_params=pltpu.CompilerParams(
            dimension_semantics=("parallel",),                        # v7x: 2 TCs
            vmem_limit_bytes=32 * 1024 * 1024),
    )(X, wc, bc2, w1, b12, w2, b22)
    return out[:N]


def reference(x, params):
    """Pure-JAX f32 reference following the PyTorch ops exactly (NCHW)."""
    Wc, bc, W1, b1, W2, b2 = params
    y = jax.lax.conv_general_dilated(
        x, Wc, window_strides=(1, 1), padding='SAME',
        dimension_numbers=('NCHW', 'OIHW', 'NCHW'))
    y = jnp.maximum(y + bc.reshape(1, COUT, 1, 1), 0.0)
    y = jax.lax.reduce_window(y, -jnp.inf, jax.lax.max,
                              (1, 1, 1, 2), (1, 1, 1, 2), 'VALID')
    flat = y.reshape(y.shape[0], -1)                 # channel-major, like torch Flatten
    z1 = jnp.maximum(flat @ W1.T + b1, 0.0)
    z2 = z1 @ W2.T + b2
    return jax.nn.softmax(z2, axis=1)


if __name__ == "__main__":
    key = jax.random.PRNGKey(0)
    kx, k1, k2, k3, k4, k5, k6 = jax.random.split(key, 7)

    # Deterministic synthetic parameters (PyTorch layouts / shapes).
    params = (
        0.1 * jax.random.normal(k1, (COUT, CIN, 1, KW), jnp.float32),   # conv weight
        0.1 * jax.random.normal(k2, (COUT,), jnp.float32),              # conv bias
        0.1 * jax.random.normal(k3, (HID, COUT * WPOOL), jnp.float32),  # fc1 weight
        0.1 * jax.random.normal(k4, (HID,), jnp.float32),               # fc1 bias
        0.1 * jax.random.normal(k5, (NCLS, HID), jnp.float32),          # fc2 weight
        0.1 * jax.random.normal(k6, (NCLS,), jnp.float32),              # fc2 bias
    )

    # Input shape implied by the module: (N, 20, 1, 20) NCHW.
    N = 50
    x = jax.random.normal(kx, (N, CIN, H, W), jnp.float32)
    ref = reference(x, params)

    # Default tile (auto-split into 2 tiles of 32) and an explicit small tile
    # (4 tiles of 16) to exercise the multi-tile + batch-padding paths.
    out_a = jax.block_until_ready(seq_64x1_16(x, params))
    out_b = jax.block_until_ready(seq_64x1_16(x, params, tb=16))

    # bf16 conv/fc1 operands -> relaxed tolerance vs the f32 reference.
    np.testing.assert_allclose(np.asarray(out_a), np.asarray(ref),
                               rtol=2e-2, atol=2e-2)
    np.testing.assert_allclose(np.asarray(out_b), np.asarray(ref),
                               rtol=2e-2, atol=2e-2)
    print("KERNEL_OK")
</pallas_src>

<mosaic_0001>
module attributes {stable_mosaic.version = 11 : i64} {
  func.func @seq_kernel(%arg0: i32, %arg1: memref<20x32x100xbf16, #tpu.memory_space<vmem>>, %arg2: memref<100x64xbf16, #tpu.memory_space<vmem>>, %arg3: memref<1x64xf32, #tpu.memory_space<vmem>>, %arg4: memref<10x64x16xbf16, #tpu.memory_space<vmem>>, %arg5: memref<1x16xf32, #tpu.memory_space<vmem>>, %arg6: memref<16x2xf32, #tpu.memory_space<vmem>>, %arg7: memref<1x2xf32, #tpu.memory_space<vmem>>, %arg8: memref<32x2xf32, #tpu.memory_space<vmem>>) attributes {dimension_semantics = [#tpu.dimension_semantics<parallel>], iteration_bounds = array<i64: 2>, scalar_prefetch = 0 : i64, scratch_operands = 0 : i64, tpu.core_type = #tpu.core_type<tc>, window_params = [{transform_indices = @transform_0, window_bounds = array<i64: 20, 32, 100>}, {pipeline_mode = #tpu.pipeline_mode<synchronous>, transform_indices = @transform_1, window_bounds = array<i64: 100, 64>}, {pipeline_mode = #tpu.pipeline_mode<synchronous>, transform_indices = @transform_2, window_bounds = array<i64: 1, 64>}, {pipeline_mode = #tpu.pipeline_mode<synchronous>, transform_indices = @transform_3, window_bounds = array<i64: 10, 64, 16>}, {pipeline_mode = #tpu.pipeline_mode<synchronous>, transform_indices = @transform_4, window_bounds = array<i64: 1, 16>}, {pipeline_mode = #tpu.pipeline_mode<synchronous>, transform_indices = @transform_5, window_bounds = array<i64: 16, 2>}, {pipeline_mode = #tpu.pipeline_mode<synchronous>, transform_indices = @transform_6, window_bounds = array<i64: 1, 2>}, {transform_indices = @transform_7, window_bounds = array<i64: 32, 2>}]} {
    %c0 = arith.constant 0 : index
    %c0_0 = arith.constant 0 : index
    %c0_1 = arith.constant 0 : index
    %0 = vector.load %arg1[%c0, %c0_0, %c0_1] : memref<20x32x100xbf16, #tpu.memory_space<vmem>>, vector<20x32x100xbf16>
    %1 = vector.shape_cast %0 : vector<20x32x100xbf16> to vector<640x100xbf16>
    %c0_2 = arith.constant 0 : index
    %c0_3 = arith.constant 0 : index
    %2 = vector.load %arg2[%c0_2, %c0_3] : memref<100x64xbf16, #tpu.memory_space<vmem>>, vector<100x64xbf16>
    %cst = arith.constant dense<0.000000e+00> : vector<640x64xf32>
    %3 = tpu.matmul %1, %2, %cst {dimension_numbers = #tpu.dot_dimension_numbers<[1], [0], [0], [1], [0, 0, 1, 1], [], []>} : vector<640x100xbf16>, vector<100x64xbf16>, vector<640x64xf32> -> vector<640x64xf32>
    %c0_4 = arith.constant 0 : index
    %c0_5 = arith.constant 0 : index
    %4 = vector.load %arg3[%c0_4, %c0_5] : memref<1x64xf32, #tpu.memory_space<vmem>>, vector<1x64xf32>
    %5 = vector.broadcast %4 : vector<1x64xf32> to vector<640x64xf32>
    %6 = arith.addf %3, %5 : vector<640x64xf32>
    %cst_6 = arith.constant 0.000000e+00 : f32
    %7 = vector.broadcast %cst_6 : f32 to vector<640x64xf32>
    %8 = arith.maximumf %6, %7 : vector<640x64xf32>
    %9 = vector.shape_cast %8 : vector<640x64xf32> to vector<10x2x32x64xf32>
    %cst_7 = arith.constant dense<0xFF800000> : vector<10x32x64xf32>
    %10 = vector.multi_reduction <maximumf>, %9, %cst_7 [1] : vector<10x2x32x64xf32> to vector<10x32x64xf32>
    %11 = arith.truncf %10 : vector<10x32x64xf32> to vector<10x32x64xbf16>
    %cst_8 = arith.constant 0.000000e+00 : f32
    %12 = vector.broadcast %cst_8 : f32 to vector<32x16xf32>
    %13 = vector.extract_strided_slice %11 {offsets = [0, 0, 0], sizes = [1, 32, 64], strides = [1, 1, 1]} : vector<10x32x64xbf16> to vector<1x32x64xbf16>
    %14 = vector.shape_cast %13 : vector<1x32x64xbf16> to vector<32x64xbf16>
    %c0_9 = arith.constant 0 : index
    %c0_10 = arith.constant 0 : index
    %c0_11 = arith.constant 0 : index
    %15 = vector.load %arg4[%c0_9, %c0_10, %c0_11] : memref<10x64x16xbf16, #tpu.memory_space<vmem>>, vector<1x64x16xbf16>
    %16 = vector.shape_cast %15 : vector<1x64x16xbf16> to vector<64x16xbf16>
    %cst_12 = arith.constant dense<0.000000e+00> : vector<32x16xf32>
    %17 = tpu.matmul %14, %16, %cst_12 {dimension_numbers = #tpu.dot_dimension_numbers<[1], [0], [0], [1], [0, 0, 1, 1], [], []>} : vector<32x64xbf16>, vector<64x16xbf16>, vector<32x16xf32> -> vector<32x16xf32>
    %18 = arith.addf %12, %17 : vector<32x16xf32>
    %19 = vector.extract_strided_slice %11 {offsets = [1, 0, 0], sizes = [1, 32, 64], strides = [1, 1, 1]} : vector<10x32x64xbf16> to vector<1x32x64xbf16>
    %20 = vector.shape_cast %19 : vector<1x32x64xbf16> to vector<32x64xbf16>
    %c1 = arith.constant 1 : index
    %c0_13 = arith.constant 0 : index
    %c0_14 = arith.constant 0 : index
    %21 = vector.load %arg4[%c1, %c0_13, %c0_14] : memref<10x64x16xbf16, #tpu.memory_space<vmem>>, vector<1x64x16xbf16>
    %22 = vector.shape_cast %21 : vector<1x64x16xbf16> to vector<64x16xbf16>
    %cst_15 = arith.constant dense<0.000000e+00> : vector<32x16xf32>
    %23 = tpu.matmul %20, %22, %cst_15 {dimension_numbers = #tpu.dot_dimension_numbers<[1], [0], [0], [1], [0, 0, 1, 1], [], []>} : vector<32x64xbf16>, vector<64x16xbf16>, vector<32x16xf32> -> vector<32x16xf32>
    %24 = arith.addf %18, %23 : vector<32x16xf32>
    %25 = vector.extract_strided_slice %11 {offsets = [2, 0, 0], sizes = [1, 32, 64], strides = [1, 1, 1]} : vector<10x32x64xbf16> to vector<1x32x64xbf16>
    %26 = vector.shape_cast %25 : vector<1x32x64xbf16> to vector<32x64xbf16>
    %c2 = arith.constant 2 : index
    %c0_16 = arith.constant 0 : index
    %c0_17 = arith.constant 0 : index
    %27 = vector.load %arg4[%c2, %c0_16, %c0_17] : memref<10x64x16xbf16, #tpu.memory_space<vmem>>, vector<1x64x16xbf16>
    %28 = vector.shape_cast %27 : vector<1x64x16xbf16> to vector<64x16xbf16>
    %cst_18 = arith.constant dense<0.000000e+00> : vector<32x16xf32>
    %29 = tpu.matmul %26, %28, %cst_18 {dimension_numbers = #tpu.dot_dimension_numbers<[1], [0], [0], [1], [0, 0, 1, 1], [], []>} : vector<32x64xbf16>, vector<64x16xbf16>, vector<32x16xf32> -> vector<32x16xf32>
    %30 = arith.addf %24, %29 : vector<32x16xf32>
    %31 = vector.extract_strided_slice %11 {offsets = [3, 0, 0], sizes = [1, 32, 64], strides = [1, 1, 1]} : vector<10x32x64xbf16> to vector<1x32x64xbf16>
    %32 = vector.shape_cast %31 : vector<1x32x64xbf16> to vector<32x64xbf16>
    %c3 = arith.constant 3 : index
    %c0_19 = arith.constant 0 : index
    %c0_20 = arith.constant 0 : index
    %33 = vector.load %arg4[%c3, %c0_19, %c0_20] : memref<10x64x16xbf16, #tpu.memory_space<vmem>>, vector<1x64x16xbf16>
    %34 = vector.shape_cast %33 : vector<1x64x16xbf16> to vector<64x16xbf16>
    %cst_21 = arith.constant dense<0.000000e+00> : vector<32x16xf32>
    %35 = tpu.matmul %32, %34, %cst_21 {dimension_numbers = #tpu.dot_dimension_numbers<[1], [0], [0], [1], [0, 0, 1, 1], [], []>} : vector<32x64xbf16>, vector<64x16xbf16>, vector<32x16xf32> -> vector<32x16xf32>
    %36 = arith.addf %30, %35 : vector<32x16xf32>
    %37 = vector.extract_strided_slice %11 {offsets = [4, 0, 0], sizes = [1, 32, 64], strides = [1, 1, 1]} : vector<10x32x64xbf16> to vector<1x32x64xbf16>
    %38 = vector.shape_cast %37 : vector<1x32x64xbf16> to vector<32x64xbf16>
    %c4 = arith.constant 4 : index
    %c0_22 = arith.constant 0 : index
    %c0_23 = arith.constant 0 : index
    %39 = vector.load %arg4[%c4, %c0_22, %c0_23] : memref<10x64x16xbf16, #tpu.memory_space<vmem>>, vector<1x64x16xbf16>
    %40 = vector.shape_cast %39 : vector<1x64x16xbf16> to vector<64x16xbf16>
    %cst_24 = arith.constant dense<0.000000e+00> : vector<32x16xf32>
    %41 = tpu.matmul %38, %40, %cst_24 {dimension_numbers = #tpu.dot_dimension_numbers<[1], [0], [0], [1], [0, 0, 1, 1], [], []>} : vector<32x64xbf16>, vector<64x16xbf16>, vector<32x16xf32> -> vector<32x16xf32>
    %42 = arith.addf %36, %41 : vector<32x16xf32>
    %43 = vector.extract_strided_slice %11 {offsets = [5, 0, 0], sizes = [1, 32, 64], strides = [1, 1, 1]} : vector<10x32x64xbf16> to vector<1x32x64xbf16>
    %44 = vector.shape_cast %43 : vector<1x32x64xbf16> to vector<32x64xbf16>
    %c5 = arith.constant 5 : index
    %c0_25 = arith.constant 0 : index
    %c0_26 = arith.constant 0 : index
    %45 = vector.load %arg4[%c5, %c0_25, %c0_26] : memref<10x64x16xbf16, #tpu.memory_space<vmem>>, vector<1x64x16xbf16>
    %46 = vector.shape_cast %45 : vector<1x64x16xbf16> to vector<64x16xbf16>
    %cst_27 = arith.constant dense<0.000000e+00> : vector<32x16xf32>
    %47 = tpu.matmul %44, %46, %cst_27 {dimension_numbers = #tpu.dot_dimension_numbers<[1], [0], [0], [1], [0, 0, 1, 1], [], []>} : vector<32x64xbf16>, vector<64x16xbf16>, vector<32x16xf32> -> vector<32x16xf32>
    %48 = arith.addf %42, %47 : vector<32x16xf32>
    %49 = vector.extract_strided_slice %11 {offsets = [6, 0, 0], sizes = [1, 32, 64], strides = [1, 1, 1]} : vector<10x32x64xbf16> to vector<1x32x64xbf16>
    %50 = vector.shape_cast %49 : vector<1x32x64xbf16> to vector<32x64xbf16>
    %c6 = arith.constant 6 : index
    %c0_28 = arith.constant 0 : index
    %c0_29 = arith.constant 0 : index
    %51 = vector.load %arg4[%c6, %c0_28, %c0_29] : memref<10x64x16xbf16, #tpu.memory_space<vmem>>, vector<1x64x16xbf16>
    %52 = vector.shape_cast %51 : vector<1x64x16xbf16> to vector<64x16xbf16>
    %cst_30 = arith.constant dense<0.000000e+00> : vector<32x16xf32>
    %53 = tpu.matmul %50, %52, %cst_30 {dimension_numbers = #tpu.dot_dimension_numbers<[1], [0], [0], [1], [0, 0, 1, 1], [], []>} : vector<32x64xbf16>, vector<64x16xbf16>, vector<32x16xf32> -> vector<32x16xf32>
    %54 = arith.addf %48, %53 : vector<32x16xf32>
    %55 = vector.extract_strided_slice %11 {offsets = [7, 0, 0], sizes = [1, 32, 64], strides = [1, 1, 1]} : vector<10x32x64xbf16> to vector<1x32x64xbf16>
    %56 = vector.shape_cast %55 : vector<1x32x64xbf16> to vector<32x64xbf16>
    %c7 = arith.constant 7 : index
    %c0_31 = arith.constant 0 : index
    %c0_32 = arith.constant 0 : index
    %57 = vector.load %arg4[%c7, %c0_31, %c0_32] : memref<10x64x16xbf16, #tpu.memory_space<vmem>>, vector<1x64x16xbf16>
    %58 = vector.shape_cast %57 : vector<1x64x16xbf16> to vector<64x16xbf16>
    %cst_33 = arith.constant dense<0.000000e+00> : vector<32x16xf32>
    %59 = tpu.matmul %56, %58, %cst_33 {dimension_numbers = #tpu.dot_dimension_numbers<[1], [0], [0], [1], [0, 0, 1, 1], [], []>} : vector<32x64xbf16>, vector<64x16xbf16>, vector<32x16xf32> -> vector<32x16xf32>
    %60 = arith.addf %54, %59 : vector<32x16xf32>
    %61 = vector.extract_strided_slice %11 {offsets = [8, 0, 0], sizes = [1, 32, 64], strides = [1, 1, 1]} : vector<10x32x64xbf16> to vector<1x32x64xbf16>
    %62 = vector.shape_cast %61 : vector<1x32x64xbf16> to vector<32x64xbf16>
    %c8 = arith.constant 8 : index
    %c0_34 = arith.constant 0 : index
    %c0_35 = arith.constant 0 : index
    %63 = vector.load %arg4[%c8, %c0_34, %c0_35] : memref<10x64x16xbf16, #tpu.memory_space<vmem>>, vector<1x64x16xbf16>
    %64 = vector.shape_cast %63 : vector<1x64x16xbf16> to vector<64x16xbf16>
    %cst_36 = arith.constant dense<0.000000e+00> : vector<32x16xf32>
    %65 = tpu.matmul %62, %64, %cst_36 {dimension_numbers = #tpu.dot_dimension_numbers<[1], [0], [0], [1], [0, 0, 1, 1], [], []>} : vector<32x64xbf16>, vector<64x16xbf16>, vector<32x16xf32> -> vector<32x16xf32>
    %66 = arith.addf %60, %65 : vector<32x16xf32>
    %67 = vector.extract_strided_slice %11 {offsets = [9, 0, 0], sizes = [1, 32, 64], strides = [1, 1, 1]} : vector<10x32x64xbf16> to vector<1x32x64xbf16>
    %68 = vector.shape_cast %67 : vector<1x32x64xbf16> to vector<32x64xbf16>
    %c9 = arith.constant 9 : index
    %c0_37 = arith.constant 0 : index
    %c0_38 = arith.constant 0 : index
    %69 = vector.load %arg4[%c9, %c0_37, %c0_38] : memref<10x64x16xbf16, #tpu.memory_space<vmem>>, vector<1x64x16xbf16>
    %70 = vector.shape_cast %69 : vector<1x64x16xbf16> to vector<64x16xbf16>
    %cst_39 = arith.constant dense<0.000000e+00> : vector<32x16xf32>
    %71 = tpu.matmul %68, %70, %cst_39 {dimension_numbers = #tpu.dot_dimension_numbers<[1], [0], [0], [1], [0, 0, 1, 1], [], []>} : vector<32x64xbf16>, vector<64x16xbf16>, vector<32x16xf32> -> vector<32x16xf32>
    %72 = arith.addf %66, %71 : vector<32x16xf32>
    %c0_40 = arith.constant 0 : index
    %c0_41 = arith.constant 0 : index
    %73 = vector.load %arg5[%c0_40, %c0_41] : memref<1x16xf32, #tpu.memory_space<vmem>>, vector<1x16xf32>
    %74 = vector.broadcast %73 : vector<1x16xf32> to vector<32x16xf32>
    %75 = arith.addf %72, %74 : vector<32x16xf32>
    %cst_42 = arith.constant 0.000000e+00 : f32
    %76 = vector.broadcast %cst_42 : f32 to vector<32x16xf32>
    %77 = arith.maximumf %75, %76 : vector<32x16xf32>
    %c0_43 = arith.constant 0 : index
    %c0_44 = arith.constant 0 : index
    %78 = vector.load %arg6[%c0_43, %c0_44] : memref<16x2xf32, #tpu.memory_space<vmem>>, vector<16x2xf32>
    %cst_45 = arith.constant dense<0.000000e+00> : vector<32x2xf32>
    %79 = tpu.matmul %77, %78, %cst_45 {dimension_numbers = #tpu.dot_dimension_numbers<[1], [0], [0], [1], [0, 0, 1, 1], [], []>} : vector<32x16xf32>, vector<16x2xf32>, vector<32x2xf32> -> vector<32x2xf32>
    %c0_46 = arith.constant 0 : index
    %c0_47 = arith.constant 0 : index
    %80 = vector.load %arg7[%c0_46, %c0_47] : memref<1x2xf32, #tpu.memory_space<vmem>>, vector<1x2xf32>
    %81 = vector.broadcast %80 : vector<1x2xf32> to vector<32x2xf32>
    %82 = arith.addf %79, %81 : vector<32x2xf32>
    %cst_48 = arith.constant dense<0xFF800000> : vector<32xf32>
    %83 = vector.multi_reduction <maximumf>, %82, %cst_48 [1] : vector<32x2xf32> to vector<32xf32>
    %84 = vector.shape_cast %83 : vector<32xf32> to vector<32x1xf32>
    %85 = vector.broadcast %84 : vector<32x1xf32> to vector<32x2xf32>
    %86 = arith.subf %82, %85 : vector<32x2xf32>
    %87 = math.exp %86 : vector<32x2xf32>
    %cst_49 = arith.constant dense<0.000000e+00> : vector<32xf32>
    %88 = vector.multi_reduction <add>, %87, %cst_49 [1] : vector<32x2xf32> to vector<32xf32>
    %89 = vector.shape_cast %88 : vector<32xf32> to vector<32x1xf32>
    %90 = vector.broadcast %89 : vector<32x1xf32> to vector<32x2xf32>
    %91 = arith.divf %87, %90 : vector<32x2xf32>
    %c0_50 = arith.constant 0 : index
    %c0_51 = arith.constant 0 : index
    %92 = vector.load %arg8[%c0_50, %c0_51] : memref<32x2xf32, #tpu.memory_space<vmem>>, vector<32x2xf32>
    tpu.vector_store %arg8[%c0_50, %c0_51], %91 {strides = array<i32>} : memref<32x2xf32, #tpu.memory_space<vmem>>, vector<32x2xf32>,
    return
  }
  func.func @transform_0(%arg0: i32) -> (i32, i32, i32) {
    %c0_i32 = arith.constant 0 : i32
    %c0_i32_0 = arith.constant 0 : i32
    %c0_i32_1 = arith.constant 0 : i32
    return %c0_i32, %arg0, %c0_i32_0 : i32, i32, i32
  }
  func.func @transform_1(%arg0: i32) -> (i32, i32) {
    %c0_i32 = arith.constant 0 : i32
    %c0_i32_0 = arith.constant 0 : i32
    %c0_i32_1 = arith.constant 0 : i32
    return %c0_i32, %c0_i32_0 : i32, i32
  }
  func.func @transform_2(%arg0: i32) -> (i32, i32) {
    %c0_i32 = arith.constant 0 : i32
    %c0_i32_0 = arith.constant 0 : i32
    %c0_i32_1 = arith.constant 0 : i32
    return %c0_i32, %c0_i32_0 : i32, i32
  }
  func.func @transform_3(%arg0: i32) -> (i32, i32, i32) {
    %c0_i32 = arith.constant 0 : i32
    %c0_i32_0 = arith.constant 0 : i32
    %c0_i32_1 = arith.constant 0 : i32
    %c0_i32_2 = arith.constant 0 : i32
    return %c0_i32, %c0_i32_0, %c0_i32_1 : i32, i32, i32
  }
  func.func @transform_4(%arg0: i32) -> (i32, i32) {
    %c0_i32 = arith.constant 0 : i32
    %c0_i32_0 = arith.constant 0 : i32
    %c0_i32_1 = arith.constant 0 : i32
    return %c0_i32, %c0_i32_0 : i32, i32
  }
  func.func @transform_5(%arg0: i32) -> (i32, i32) {
    %c0_i32 = arith.constant 0 : i32
    %c0_i32_0 = arith.constant 0 : i32
    %c0_i32_1 = arith.constant 0 : i32
    return %c0_i32, %c0_i32_0 : i32, i32
  }
  func.func @transform_6(%arg0: i32) -> (i32, i32) {
    %c0_i32 = arith.constant 0 : i32
    %c0_i32_0 = arith.constant 0 : i32
    %c0_i32_1 = arith.constant 0 : i32
    return %c0_i32, %c0_i32_0 : i32, i32
  }
  func.func @transform_7(%arg0: i32) -> (i32, i32) {
    %c0_i32 = arith.constant 0 : i32
    %c0_i32_0 = arith.constant 0 : i32
    return %arg0, %c0_i32 : i32, i32
  }
}

</mosaic_0001>

<llo_original>
// kernel: tpu_custom_call.1
$region0: #{tpu_custom_call.1}
  #allocation0 [shape = 'u32[]', space=smem, size = 0x4, offset = 0x4, fixed_abs, tag = 'smem constant byte address 0x4 - core index']
  #allocation1 [shape = 'u32[144,128]{1,0:T(1,128)}', space=vmem, size = 0x12000, scoped, tag = 'internal scratch']
  #allocation4 [shape = 's32[]', space=sflag, size = 0x4, offset = 0, fixed_abs, tag = 'sflag constant byte address 0x0 - dummy sync flag']
  %s0 = inlined_call_operand.hbm [shape: bf16[20,64,100], index: 0, kind: input, shape index: {}]
  %s1 = inlined_call_operand.vmem [shape: bf16[100,64], index: 1, kind: input, shape index: {}]
  %s2 = inlined_call_operand.vmem [shape: f32[1,64], index: 2, kind: input, shape index: {}]
  %s3 = inlined_call_operand.vmem [shape: bf16[10,64,16], index: 3, kind: input, shape index: {}]
  %s4 = inlined_call_operand.vmem [shape: f32[1,16], index: 4, kind: input, shape index: {}]
  %s5 = inlined_call_operand.vmem [shape: f32[16,2], index: 5, kind: input, shape index: {}]
  %s6 = inlined_call_operand.vmem [shape: f32[1,2], index: 6, kind: input, shape index: {}]
  %s7 = inlined_call_operand.vmem [shape: f32[64,2], index: 7, kind: output, shape index: {}]
  %s8 = sld [smem:[#allocation0]]
  $region65: #{tpu_custom_call.1} parent=0
    _
  %s10 = ssub.s32 1, %s8
  %s11 = scalar_select 0, %s10, %s8
  $region1: #{tpu_custom_call.1} parent=0
    #allocation2 [shape = 'u8[327680]{0}', space=vmem, size = 0x50000, scoped, tag = 'input window, operand 0']
    #allocation3 [shape = 's32[2]{0}', space=sflag, size = 0x8, scoped, tag = 'scoped memory for tpu_custom_call.1']
    %12 = vsyncpa [#allocation3], 0
    %s13 = scalar_lea.sflag [#allocation3], 1
    %14 = vsyncpa %s13, 0
    loop: start=0, step=1, limit=4
    $region2: #{tpu_custom_call.1} parent=1 // loop_pre_header
      _
    $region3: #{tpu_custom_call.1} parent=1 // loop_header
      %s16 = sphi 0, %s20
      %p17 = scmp.ge.s32.totalorder %s16, 4
      %s26 = sphi 0, %s28
      %s29 = sphi 0, %s26
      %s30 = sphi 0, %s29
      %s46 = sphi 0, %s30
      %s50 = sphi 0, %s50
      %s52 = sphi 0, %s50
      %s53 = sphi 0, %s52
      %s67 = sphi 0, %s53
      %s71 = sphi 0, %s71
      %s73 = sphi 0, %s71
      %s74 = sphi 0, %s73
      %s88 = sphi 0, %s74
      %s92 = sphi 0, %s92
      %s94 = sphi 0, %s92
      %s95 = sphi 0, %s94
      %s109 = sphi 0, %s95
      %s113 = sphi 0, %s113
      %s115 = sphi 0, %s113
      %s116 = sphi 0, %s115
      %s130 = sphi 0, %s116
      %s134 = sphi 0, %s134
      %s136 = sphi 0, %s134
      %s137 = sphi 0, %s136
      %s151 = sphi 0, %s137
      %s155 = sphi 0, %s155
      %s157 = sphi 0, %s155
      %s158 = sphi 0, %s157
      %s172 = sphi 0, %s158
      %s178 = sphi 0, %s180
      %s181 = sphi 0, %s178
      %s182 = sphi 0, %s181
      %s198 = sphi 0, %s182
    $region4: #{tpu_custom_call.1} parent=1 // loop_header_branch
      %19 = sbr.rel (%p17) target = $region8
    $region5: #{tpu_custom_call.1} parent=1 // loop_body
      %s21 = ssub.s32 %s16, 1
      %s22 = ssub.s32 %s16, 2
      %s23 = sadd.s32 %s16, 1
      %s24 = ssub.s32 %s16, %s23
      %p25 = scmp.eq.s32.totalorder %s24, 0
      %s27 = sadd.s32 %s26, 1
      %s28 = scalar_select %p25, %s26, %s27
      %p31 = pneg %p25
      %p32 = scmp.eq.s32.totalorder %s16, 1
      %p33 = por %p31, %p32
      %p34 = scmp.ne.s32.totalorder %s26, %s29
      %p35 = scmp.eq.s32.totalorder %s16, 0
      %p36 = por %p34, %p35
      %p37 = scmp.ne.s32.totalorder %s26, %s29
      %p38 = scmp.eq.s32.totalorder %s21, 1
      %p39 = por %p37, %p38
      %p40 = scmp.ne.s32.totalorder %s29, %s30
      %p41 = scmp.eq.s32.totalorder %s21, 0
      %p42 = por %p40, %p41
      %p43 = scmp.ne.s32.totalorder %s29, %s30
      %p44 = scmp.eq.s32.totalorder %s22, 1
      %p45 = por %p43, %p44
      %p47 = scmp.ne.s32.totalorder %s30, %s46
      %p48 = scmp.eq.s32.totalorder %s22, 0
      %p49 = por %p47, %p48
      %s51 = sadd.s32 %s50, 1
      %p54 = scmp.eq.s32.totalorder %s16, 1
      %p55 = scmp.ne.s32.totalorder %s50, %s52
      %p56 = scmp.eq.s32.totalorder %s16, 0
      %p57 = por %p55, %p56
      %p58 = scmp.ne.s32.totalorder %s50, %s52
      %p59 = scmp.eq.s32.totalorder %s21, 1
      %p60 = por %p58, %p59
      %p61 = scmp.ne.s32.totalorder %s52, %s53
      %p62 = scmp.eq.s32.totalorder %s21, 0
      %p63 = por %p61, %p62
      %p64 = scmp.ne.s32.totalorder %s52, %s53
      %p65 = scmp.eq.s32.totalorder %s22, 1
      %p66 = por %p64, %p65
      %p68 = scmp.ne.s32.totalorder %s53, %s67
      %p69 = scmp.eq.s32.totalorder %s22, 0
      %p70 = por %p68, %p69
      %s72 = sadd.s32 %s71, 1
      %p75 = scmp.eq.s32.totalorder %s16, 1
      %p76 = scmp.ne.s32.totalorder %s71, %s73
      %p77 = scmp.eq.s32.totalorder %s16, 0
      %p78 = por %p76, %p77
      %p79 = scmp.ne.s32.totalorder %s71, %s73
      %p80 = scmp.eq.s32.totalorder %s21, 1
      %p81 = por %p79, %p80
      %p82 = scmp.ne.s32.totalorder %s73, %s74
      %p83 = scmp.eq.s32.totalorder %s21, 0
      %p84 = por %p82, %p83
      %p85 = scmp.ne.s32.totalorder %s73, %s74
      %p86 = scmp.eq.s32.totalorder %s22, 1
      %p87 = por %p85, %p86
      %p89 = scmp.ne.s32.totalorder %s74, %s88
      %p90 = scmp.eq.s32.totalorder %s22, 0
      %p91 = por %p89, %p90
      %s93 = sadd.s32 %s92, 1
      %p96 = scmp.eq.s32.totalorder %s16, 1
      %p97 = scmp.ne.s32.totalorder %s92, %s94
      %p98 = scmp.eq.s32.totalorder %s16, 0
      %p99 = por %p97, %p98
      %p100 = scmp.ne.s32.totalorder %s92, %s94
      %p101 = scmp.eq.s32.totalorder %s21, 1
      %p102 = por %p100, %p101
      %p103 = scmp.ne.s32.totalorder %s94, %s95
      %p104 = scmp.eq.s32.totalorder %s21, 0
      %p105 = por %p103, %p104
      %p106 = scmp.ne.s32.totalorder %s94, %s95
      %p107 = scmp.eq.s32.totalorder %s22, 1
      %p108 = por %p106, %p107
      %p110 = scmp.ne.s32.totalorder %s95, %s109
      %p111 = scmp.eq.s32.totalorder %s22, 0
      %p112 = por %p110, %p111
      %s114 = sadd.s32 %s113, 1
      %p117 = scmp.eq.s32.totalorder %s16, 1
      %p118 = scmp.ne.s32.totalorder %s113, %s115
      %p119 = scmp.eq.s32.totalorder %s16, 0
      %p120 = por %p118, %p119
      %p121 = scmp.ne.s32.totalorder %s113, %s115
      %p122 = scmp.eq.s32.totalorder %s21, 1
      %p123 = por %p121, %p122
      %p124 = scmp.ne.s32.totalorder %s115, %s116
      %p125 = scmp.eq.s32.totalorder %s21, 0
      %p126 = por %p124, %p125
      %p127 = scmp.ne.s32.totalorder %s115, %s116
      %p128 = scmp.eq.s32.totalorder %s22, 1
      %p129 = por %p127, %p128
      %p131 = scmp.ne.s32.totalorder %s116, %s130
      %p132 = scmp.eq.s32.totalorder %s22, 0
      %p133 = por %p131, %p132
      %s135 = sadd.s32 %s134, 1
      %p138 = scmp.eq.s32.totalorder %s16, 1
      %p139 = scmp.ne.s32.totalorder %s134, %s136
      %p140 = scmp.eq.s32.totalorder %s16, 0
      %p141 = por %p139, %p140
      %p142 = scmp.ne.s32.totalorder %s134, %s136
      %p143 = scmp.eq.s32.totalorder %s21, 1
      %p144 = por %p142, %p143
      %p145 = scmp.ne.s32.totalorder %s136, %s137
      %p146 = scmp.eq.s32.totalorder %s21, 0
      %p147 = por %p145, %p146
      %p148 = scmp.ne.s32.totalorder %s136, %s137
      %p149 = scmp.eq.s32.totalorder %s22, 1
      %p150 = por %p148, %p149
      %p152 = scmp.ne.s32.totalorder %s137, %s151
      %p153 = scmp.eq.s32.totalorder %s22, 0
      %p154 = por %p152, %p153
      %s156 = sadd.s32 %s155, 1
      %p159 = scmp.eq.s32.totalorder %s16, 1
      %p160 = scmp.ne.s32.totalorder %s155, %s157
      %p161 = scmp.eq.s32.totalorder %s16, 0
      %p162 = por %p160, %p161
      %p163 = scmp.ne.s32.totalorder %s155, %s157
      %p164 = scmp.eq.s32.totalorder %s21, 1
      %p165 = por %p163, %p164
      %p166 = scmp.ne.s32.totalorder %s157, %s158
      %p167 = scmp.eq.s32.totalorder %s21, 0
      %p168 = por %p166, %p167
      %p169 = scmp.ne.s32.totalorder %s157, %s158
      %p170 = scmp.eq.s32.totalorder %s22, 1
      %p171 = por %p169, %p170
      %p173 = scmp.ne.s32.totalorder %s158, %s172
      %p174 = scmp.eq.s32.totalorder %s22, 0
      %p175 = por %p173, %p174
      %s176 = ssub.s32 %s16, %s23
      %p177 = scmp.eq.s32.totalorder %s176, 0
      %s179 = sadd.s32 %s178, 1
      %s180 = scalar_select %p177, %s178, %s179
      %p183 = pneg %p177
      %p184 = scmp.eq.s32.totalorder %s16, 1
      %p185 = por %p183, %p184
      %p186 = scmp.ne.s32.totalorder %s178, %s181
      %p187 = scmp.eq.s32.totalorder %s16, 0
      %p188 = por %p186, %p187
      %p189 = scmp.ne.s32.totalorder %s178, %s181
      %p190 = scmp.eq.s32.totalorder %s21, 1
      %p191 = por %p189, %p190
      %p192 = scmp.ne.s32.totalorder %s181, %s182
      %p193 = scmp.eq.s32.totalorder %s21, 0
      %p194 = por %p192, %p193
      %p195 = scmp.ne.s32.totalorder %s181, %s182
      %p196 = scmp.eq.s32.totalorder %s22, 1
      %p197 = por %p195, %p196
      %p199 = scmp.ne.s32.totalorder %s182, %s198
      %p200 = scmp.eq.s32.totalorder %s22, 0
      %p201 = por %p199, %p200
      %p202 = scmp.le.s32.totalorder 1, %s16
      %p203 = scmp.lt.s32.totalorder %s16, 3
      %p204 = pnand %p202, %p203
      %p205 = pneg %p204
      // Predicated region
      $region9: #{tpu_custom_call.1} parent=5 // pred_check
        _
      $region10: #{tpu_custom_call.1} parent=5 // pred_check_branch
        %207 = sbr.rel (%p204) target = $region12
      $region11: #{tpu_custom_call.1} parent=5 // pred_region
        %s208 = ssub.s32 %s16, 1
        // Predicated region
        $region13: #{tpu_custom_call.1} parent=11 // pred_check
          %p209 = pneg %p63
        $region14: #{tpu_custom_call.1} parent=11 // pred_check_branch
          %211 = sbr.rel (%p209) target = $region16
        $region15: #{tpu_custom_call.1} parent=11 // pred_region
          _
        $region16: #{tpu_custom_call.1} parent=11 // pred_fallthru
          _
        // Predicated region
        $region17: #{tpu_custom_call.1} parent=11 // pred_check
          %p212 = pneg %p84
        $region18: #{tpu_custom_call.1} parent=11 // pred_check_branch
          %214 = sbr.rel (%p212) target = $region20
        $region19: #{tpu_custom_call.1} parent=11 // pred_region
          _
        $region20: #{tpu_custom_call.1} parent=11 // pred_fallthru
          _
        // Predicated region
        $region21: #{tpu_custom_call.1} parent=11 // pred_check
          %p215 = pneg %p105
        $region22: #{tpu_custom_call.1} parent=11 // pred_check_branch
          %217 = sbr.rel (%p215) target = $region24
        $region23: #{tpu_custom_call.1} parent=11 // pred_region
          _
        $region24: #{tpu_custom_call.1} parent=11 // pred_fallthru
          _
        // Predicated region
        $region25: #{tpu_custom_call.1} parent=11 // pred_check
          %p218 = pneg %p126
        $region26: #{tpu_custom_call.1} parent=11 // pred_check_branch
          %220 = sbr.rel (%p218) target = $region28
        $region27: #{tpu_custom_call.1} parent=11 // pred_region
          _
        $region28: #{tpu_custom_call.1} parent=11 // pred_fallthru
          _
        // Predicated region
        $region29: #{tpu_custom_call.1} parent=11 // pred_check
          %p221 = pneg %p147
        $region30: #{tpu_custom_call.1} parent=11 // pred_check_branch
          %223 = sbr.rel (%p221) target = $region32
        $region31: #{tpu_custom_call.1} parent=11 // pred_region
          _
        $region32: #{tpu_custom_call.1} parent=11 // pred_fallthru
          _
        // Predicated region
        $region33: #{tpu_custom_call.1} parent=11 // pred_check
          %p224 = pneg %p168
        $region34: #{tpu_custom_call.1} parent=11 // pred_check_branch
          %226 = sbr.rel (%p224) target = $region36
        $region35: #{tpu_custom_call.1} parent=11 // pred_region
          _
        $region36: #{tpu_custom_call.1} parent=11 // pred_fallthru
          _
      $region12: #{tpu_custom_call.1} parent=5 // pred_fallthru
        _
      %p227 = scmp.lt.s32.totalorder %s16, 2
      // Predicated region
      $region37: #{tpu_custom_call.1} parent=5 // pred_check
        %p228 = pneg %p227
      $region38: #{tpu_custom_call.1} parent=5 // pred_check_branch
        %230 = sbr.rel (%p228) target = $region40
      $region39: #{tpu_custom_call.1} parent=5 // pred_region
        // Predicated region
        $region41: #{tpu_custom_call.1} parent=39 // pred_check
          %p231 = pneg %p36
        $region42: #{tpu_custom_call.1} parent=39 // pred_check_branch
          %233 = sbr.rel (%p231) target = $region44
        $region43: #{tpu_custom_call.1} parent=39 // pred_region
          #allocation5 [shape = 'u32[6]{0}', space=smem, size = 0x18, scoped, tag = 'DMA stride descriptor']
          %s234 = sand.u32 %s26, 1
          %s235 = scalar_lea.sflag [#allocation3], %s234
          %s236 = sand.u32 %s26, 1
          %s237 = smul.addr %s236, 320
          %s238 = scalar_lea.vmem [#allocation2], %s237
          %s239 = smul.u32 4, %s16
          %s241 = ssub.s32 5120, 5120
          %242 = vsyncadd %s235, %s241
          %s243 = smul.addr %s239, 64
          %s244 = scalar_lea.hbm %s0, %s243
          %s246 = sshll.u32 1, 14
          %s247 = sxor.u32 4294967295, %s246
          %s249 = sld [smem:[#allocation0]]
          %s250 = sadd.s32 2, %s249
          %s252 = sshll.u32 7, 26
          %s253 = sxor.u32 4294967295, %s252
          %s254 = sand.u32 0, %s253
          %s255 = sshll.u32 %s250, 26
          %s256 = sor.u32 %s254, %s255
          %s257 = sshll.u32 %s238, 4
          %s258 = int_to_ptr.vmem [resolvable:$true] %s257
          %264 = sst [smem:[#allocation5]] 512
          %s265 = scalar_lea.smem [#allocation5], 1
          %266 = sst [smem:[%s265]] 256
          %s267 = scalar_lea.smem [#allocation5], 2
          %268 = sst [smem:[%s267]] 4
          %s269 = scalar_lea.smem [#allocation5], 3
          %270 = sst [smem:[%s269]] 64
          %s271 = scalar_lea.smem [#allocation5], 4
          %272 = sst [smem:[%s271]] 64
          %s273 = scalar_lea.smem [#allocation5], 5
          %274 = sst [smem:[%s273]] 4
          %276 = dma.general %s244, 5120, %s258, %s235, [#allocation4], [#allocation5], %s256, 0
        $region44: #{tpu_custom_call.1} parent=39 // pred_fallthru
          _
      $region40: #{tpu_custom_call.1} parent=5 // pred_fallthru
        _
      %p277 = scmp.le.s32.totalorder 1, %s16
      %p278 = scmp.lt.s32.totalorder %s16, 3
      %p279 = pnand %p277, %p278
      %p280 = pneg %p279
      // Predicated region
      $region45: #{tpu_custom_call.1} parent=5 // pred_check
        _
      $region46: #{tpu_custom_call.1} parent=5 // pred_check_branch
        %282 = sbr.rel (%p279) target = $region48
      $region47: #{tpu_custom_call.1} parent=5 // pred_region
        %s283 = ssub.s32 %s16, 1
        %s284 = sand.u32 %s29, 1
        %s285 = scalar_lea.sflag [#allocation3], %s284
        %s286 = sand.u32 %s29, 1
        %s287 = smul.addr %s286, 320
        %s288 = scalar_lea.vmem [#allocation2], %s287
        // Predicated region
        $region49: #{tpu_custom_call.1} parent=47 // pred_check
          %p289 = pneg %p42
        $region50: #{tpu_custom_call.1} parent=47 // pred_check_branch
          %291 = sbr.rel (%p289) target = $region52
        $region51: #{tpu_custom_call.1} parent=47 // pred_region
          %292 = dma.done %s285, 5120
        $region52: #{tpu_custom_call.1} parent=47 // pred_fallthru
          _
        %s293 = sand.u32 %s29, 1
        %s294 = scalar_lea.sflag [#allocation3], %s293
        %s295 = sand.u32 %s29, 1
        %s296 = smul.addr %s295, 320
        %s297 = scalar_lea.vmem [#allocation2], %s296
        %p298 = pneg %p42
        %p299 = pneg %p39
        %p300 = pneg %p63
        %p301 = pneg %p60
        %p302 = pneg %p84
        %p303 = pneg %p81
        %p304 = pneg %p105
        %p305 = pneg %p102
        %p306 = pneg %p126
        %p307 = pneg %p123
        %p308 = pneg %p147
        %p309 = pneg %p144
        %p310 = pneg %p168
        %p311 = pneg %p165
        %p312 = pneg %p194
        %p313 = pneg %p191
        %s314 = smul.u32 4, %s21
        %p315 = scmp.lt.s32.totalorder %s314, 7
        %s316 = scalar_select %p315, %s314, 7
        %s317 = smul.addr %s316, 8
        %s318 = scalar_lea.vmem %s7, %s317
        %s319 = smul.u32 4, %s21
        %s320 = smul.u32 4, %s21
        %p321 = scmp.lt.s32.totalorder %s320, 7
        %s322 = scalar_select %p321, %s320, 7
        %s323 = smul.addr %s322, 8
        %s324 = scalar_lea.vmem %s7, %s323
        %s325 = smul.u32 4, %s21
        %v327 = vld [vmem:[%s288] sm:$0xf]
        %v328 = vld [vmem:[%s288 + $0x4] sm:$0xf]
        %v329 = vld [vmem:[%s288 + $0x8] sm:$0xf]
        %v330 = vld [vmem:[%s288 + $0xc] sm:$0xf]
        %v331 = vld [vmem:[%s288 + $0x10] sm:$0xf]
        %v332 = vld [vmem:[%s288 + $0x14] sm:$0xf]
        %v333 = vld [vmem:[%s288 + $0x18] sm:$0xf]
        %v334 = vld [vmem:[%s288 + $0x1c] sm:$0xf]
        %v335 = vld [vmem:[%s288 + $0x20] sm:$0xf]
        %v336 = vld [vmem:[%s288 + $0x24] sm:$0xf]
        %v337 = vld [vmem:[%s288 + $0x28] sm:$0xf]
        %v338 = vld [vmem:[%s288 + $0x2c] sm:$0xf]
        %v339 = vld [vmem:[%s288 + $0x30] sm:$0xf]
        %v340 = vld [vmem:[%s288 + $0x34] sm:$0xf]
        %v341 = vld [vmem:[%s288 + $0x38] sm:$0xf]
        %v342 = vld [vmem:[%s288 + $0x3c] sm:$0xf]
        %v343 = vld [vmem:[%s288 + $0x40] sm:$0xf]
        %v344 = vld [vmem:[%s288 + $0x44] sm:$0xf]
        %v345 = vld [vmem:[%s288 + $0x48] sm:$0xf]
        %v346 = vld [vmem:[%s288 + $0x4c] sm:$0xf]
        %v347 = vld [vmem:[%s288 + $0x50] sm:$0xf]
        %v348 = vld [vmem:[%s288 + $0x54] sm:$0xf]
        %v349 = vld [vmem:[%s288 + $0x58] sm:$0xf]
        %v350 = vld [vmem:[%s288 + $0x5c] sm:$0xf]
        %v351 = vld [vmem:[%s288 + $0x60] sm:$0xf]
        %v352 = vld [vmem:[%s288 + $0x64] sm:$0xf]
        %v353 = vld [vmem:[%s288 + $0x68] sm:$0xf]
        %v354 = vld [vmem:[%s288 + $0x6c] sm:$0xf]
        %v355 = vld [vmem:[%s288 + $0x70] sm:$0xf]
        %v356 = vld [vmem:[%s288 + $0x74] sm:$0xf]
        %v357 = vld [vmem:[%s288 + $0x78] sm:$0xf]
        %v358 = vld [vmem:[%s288 + $0x7c] sm:$0xf]
        %v359 = vld [vmem:[%s288 + $0x80] sm:$0xf]
        %v360 = vld [vmem:[%s288 + $0x84] sm:$0xf]
        %v361 = vld [vmem:[%s288 + $0x88] sm:$0xf]
        %v362 = vld [vmem:[%s288 + $0x8c] sm:$0xf]
        %v363 = vld [vmem:[%s288 + $0x90] sm:$0xf]
        %v364 = vld [vmem:[%s288 + $0x94] sm:$0xf]
        %v365 = vld [vmem:[%s288 + $0x98] sm:$0xf]
        %v366 = vld [vmem:[%s288 + $0x9c] sm:$0xf]
        %v367 = vld [vmem:[%s288 + $0xa0] sm:$0xf]
        %v368 = vld [vmem:[%s288 + $0xa4] sm:$0xf]
        %v369 = vld [vmem:[%s288 + $0xa8] sm:$0xf]
        %v370 = vld [vmem:[%s288 + $0xac] sm:$0xf]
        %v371 = vld [vmem:[%s288 + $0xb0] sm:$0xf]
        %v372 = vld [vmem:[%s288 + $0xb4] sm:$0xf]
        %v373 = vld [vmem:[%s288 + $0xb8] sm:$0xf]
        %v374 = vld [vmem:[%s288 + $0xbc] sm:$0xf]
        %v375 = vld [vmem:[%s288 + $0xc0] sm:$0xf]
        %v376 = vld [vmem:[%s288 + $0xc4] sm:$0xf]
        %v377 = vld [vmem:[%s288 + $0xc8] sm:$0xf]
        %v378 = vld [vmem:[%s288 + $0xcc] sm:$0xf]
        %v379 = vld [vmem:[%s288 + $0xd0] sm:$0xf]
        %v380 = vld [vmem:[%s288 + $0xd4] sm:$0xf]
        %v381 = vld [vmem:[%s288 + $0xd8] sm:$0xf]
        %v382 = vld [vmem:[%s288 + $0xdc] sm:$0xf]
        %v383 = vld [vmem:[%s288 + $0xe0] sm:$0xf]
        %v384 = vld [vmem:[%s288 + $0xe4] sm:$0xf]
        %v385 = vld [vmem:[%s288 + $0xe8] sm:$0xf]
        %v386 = vld [vmem:[%s288 + $0xec] sm:$0xf]
        %v387 = vld [vmem:[%s288 + $0xf0] sm:$0xf]
        %v388 = vld [vmem:[%s288 + $0xf4] sm:$0xf]
        %v389 = vld [vmem:[%s288 + $0xf8] sm:$0xf]
        %v390 = vld [vmem:[%s288 + $0xfc] sm:$0xf]
        %v391 = vld [vmem:[%s288 + $0x100] sm:$0xf]
        %v392 = vld [vmem:[%s288 + $0x104] sm:$0xf]
        %v393 = vld [vmem:[%s288 + $0x108] sm:$0xf]
        %v394 = vld [vmem:[%s288 + $0x10c] sm:$0xf]
        %v395 = vld [vmem:[%s288 + $0x110] sm:$0xf]
        %v396 = vld [vmem:[%s288 + $0x114] sm:$0xf]
        %v397 = vld [vmem:[%s288 + $0x118] sm:$0xf]
        %v398 = vld [vmem:[%s288 + $0x11c] sm:$0xf]
        %v399 = vld [vmem:[%s288 + $0x120] sm:$0xf]
        %v400 = vld [vmem:[%s288 + $0x124] sm:$0xf]
        %v401 = vld [vmem:[%s288 + $0x128] sm:$0xf]
        %v402 = vld [vmem:[%s288 + $0x12c] sm:$0xf]
        %v403 = vld [vmem:[%s288 + $0x130] sm:$0xf]
        %v404 = vld [vmem:[%s288 + $0x134] sm:$0xf]
        %v405 = vld [vmem:[%s288 + $0x138] sm:$0xf]
        %v406 = vld [vmem:[%s288 + $0x13c] sm:$0xf]
        %v407 = vld [vmem:[%s1] sm:$0xf]
        %v408 = vld [vmem:[%s1 + $0x4] sm:$0xf]
        %v409 = vld [vmem:[%s1 + $0x8] sm:$0xf]
        %v410 = vld [vmem:[%s1 + $0xc] sm:$0xf]
        %v411 = vld [vmem:[%s1 + $0x10] sm:$0xf]
        %v412 = vld [vmem:[%s1 + $0x14] sm:$0xf]
        %v413 = vld [vmem:[%s1 + $0x18] sm:$0xf]
        %v414 = vld [vmem:[%s1 + $0x1c] sm:$0xf]
        %v415 = vld [vmem:[%s1 + $0x20] sm:$0xf]
        %v416 = vld [vmem:[%s1 + $0x24] sm:$0xf]
        %v417 = vld [vmem:[%s1 + $0x28] sm:$0xf]
        %v418 = vld [vmem:[%s1 + $0x2c] sm:$0xf]
        %v419 = vld [vmem:[%s1 + $0x30] sm:$0x3]
        %v420 = vld [vmem:[%s2] sm:$0x1]
        %v422 = vlaneseq
        %v423 = vshrl.u32 %v422, 7
        %v424 = vsub.s32 0, %v423
        %v425 = vrot.slane %v420, %v424
        %v507 = vunpack.c.l.b16 %v327
        %v508 = vunpack.c.l.b16 %v328
        %v509 = vunpack.c.l.b16 %v329
        %v510 = vunpack.c.l.b16 %v330
        %v511 = vunpack.c.l.b16 %v331
        %v512 = vunpack.c.l.b16 %v332
        %v513 = vunpack.c.l.b16 %v333
        %v514 = vunpack.c.l.b16 %v334
        %v515 = vunpack.c.l.b16 %v335
        %v516 = vunpack.c.l.b16 %v336
        %v517 = vunpack.c.l.b16 %v337
        %v518 = vunpack.c.l.b16 %v338
        %v519 = vunpack.c.l.b16 %v339
        %v520 = vunpack.c.l.b16 %v340
        %v521 = vunpack.c.l.b16 %v341
        %v522 = vunpack.c.l.b16 %v342
        %v523 = vunpack.c.l.b16 %v343
        %v524 = vunpack.c.l.b16 %v344
        %v525 = vunpack.c.l.b16 %v345
        %v526 = vunpack.c.l.b16 %v346
        %v527 = vunpack.c.l.b16 %v347
        %v528 = vunpack.c.l.b16 %v348
        %v529 = vunpack.c.l.b16 %v349
        %v530 = vunpack.c.l.b16 %v350
        %v531 = vunpack.c.l.b16 %v351
        %v532 = vunpack.c.l.b16 %v352
        %v533 = vunpack.c.l.b16 %v353
        %v534 = vunpack.c.l.b16 %v354
        %v535 = vunpack.c.l.b16 %v355
        %v536 = vunpack.c.l.b16 %v356
        %v537 = vunpack.c.l.b16 %v357
        %v538 = vunpack.c.l.b16 %v358
        %v539 = vunpack.c.l.b16 %v359
        %v540 = vunpack.c.l.b16 %v360
        %v541 = vunpack.c.l.b16 %v361
        %v542 = vunpack.c.l.b16 %v362
        %v543 = vunpack.c.l.b16 %v363
        %v544 = vunpack.c.l.b16 %v364
        %v545 = vunpack.c.l.b16 %v365
        %v546 = vunpack.c.l.b16 %v366
        %v547 = vunpack.c.l.b16 %v367
        %v548 = vunpack.c.l.b16 %v368
        %v549 = vunpack.c.l.b16 %v369
        %v550 = vunpack.c.l.b16 %v370
        %v551 = vunpack.c.l.b16 %v371
        %v552 = vunpack.c.l.b16 %v372
        %v553 = vunpack.c.l.b16 %v373
        %v554 = vunpack.c.l.b16 %v374
        %v555 = vunpack.c.l.b16 %v375
        %v556 = vunpack.c.l.b16 %v376
        %v557 = vunpack.c.l.b16 %v377
        %v558 = vunpack.c.l.b16 %v378
        %v559 = vunpack.c.l.b16 %v379
        %v560 = vunpack.c.l.b16 %v380
        %v561 = vunpack.c.l.b16 %v381
        %v562 = vunpack.c.l.b16 %v382
        %v563 = vunpack.c.l.b16 %v383
        %v564 = vunpack.c.l.b16 %v384
        %v565 = vunpack.c.l.b16 %v385
        %v566 = vunpack.c.l.b16 %v386
        %v567 = vunpack.c.l.b16 %v387
        %v568 = vunpack.c.l.b16 %v388
        %v569 = vunpack.c.l.b16 %v389
        %v570 = vunpack.c.l.b16 %v390
        %v571 = vunpack.c.l.b16 %v391
        %v572 = vunpack.c.l.b16 %v392
        %v573 = vunpack.c.l.b16 %v393
        %v574 = vunpack.c.l.b16 %v394
        %v575 = vunpack.c.l.b16 %v395
        %v576 = vunpack.c.l.b16 %v396
        %v577 = vunpack.c.l.b16 %v397
        %v578 = vunpack.c.l.b16 %v398
        %v579 = vunpack.c.l.b16 %v399
        %v580 = vunpack.c.l.b16 %v400
        %v581 = vunpack.c.l.b16 %v401
        %v582 = vunpack.c.l.b16 %v402
        %v583 = vunpack.c.l.b16 %v403
        %v584 = vunpack.c.l.b16 %v404
        %v585 = vunpack.c.l.b16 %v405
        %v586 = vunpack.c.l.b16 %v406
        %v587 = vpack.c.b16 %v508, %v507
        %v588 = vpack.c.b16 %v510, %v509
        %v589 = vpack.c.b16 %v512, %v511
        %v590 = vpack.c.b16 %v514, %v513
        %v591 = vpack.c.b16 %v516, %v515
        %v592 = vpack.c.b16 %v518, %v517
        %v593 = vpack.c.b16 %v520, %v519
        %v594 = vpack.c.b16 %v522, %v521
        %v595 = vpack.c.b16 %v524, %v523
        %v596 = vpack.c.b16 %v526, %v525
        %v597 = vpack.c.b16 %v528, %v527
        %v598 = vpack.c.b16 %v530, %v529
        %v599 = vpack.c.b16 %v532, %v531
        %v600 = vpack.c.b16 %v534, %v533
        %v601 = vpack.c.b16 %v536, %v535
        %v602 = vpack.c.b16 %v538, %v537
        %v603 = vpack.c.b16 %v540, %v539
        %v604 = vpack.c.b16 %v542, %v541
        %v605 = vpack.c.b16 %v544, %v543
        %v606 = vpack.c.b16 %v546, %v545
        %v607 = vpack.c.b16 %v548, %v547
        %v608 = vpack.c.b16 %v550, %v549
        %v609 = vpack.c.b16 %v552, %v551
        %v610 = vpack.c.b16 %v554, %v553
        %v611 = vpack.c.b16 %v556, %v555
        %v612 = vpack.c.b16 %v558, %v557
        %v613 = vpack.c.b16 %v560, %v559
        %v614 = vpack.c.b16 %v562, %v561
        %v615 = vpack.c.b16 %v564, %v563
        %v616 = vpack.c.b16 %v566, %v565
        %v617 = vpack.c.b16 %v568, %v567
        %v618 = vpack.c.b16 %v570, %v569
        %v619 = vpack.c.b16 %v572, %v571
        %v620 = vpack.c.b16 %v574, %v573
        %v621 = vpack.c.b16 %v576, %v575
        %v622 = vpack.c.b16 %v578, %v577
        %v623 = vpack.c.b16 %v580, %v579
        %v624 = vpack.c.b16 %v582, %v581
        %v625 = vpack.c.b16 %v584, %v583
        %v626 = vpack.c.b16 %v586, %v585
        %v640 = vunpack.c.l.b16 %v407
        %v641 = vunpack.c.l.b16 %v408
        %v642 = vunpack.c.l.b16 %v409
        %v643 = vunpack.c.l.b16 %v410
        %v644 = vunpack.c.l.b16 %v411
        %v645 = vunpack.c.l.b16 %v412
        %v646 = vunpack.c.l.b16 %v413
        %v647 = vunpack.c.l.b16 %v414
        %v648 = vunpack.c.l.b16 %v415
        %v649 = vunpack.c.l.b16 %v416
        %v650 = vunpack.c.l.b16 %v417
        %v651 = vunpack.c.l.b16 %v418
        %v652 = vunpack.c.l.b16 %v419
        %v653 = vpack.c.b16 %v641, %v640
        %v654 = vpack.c.b16 %v643, %v642
        %v655 = vpack.c.b16 %v645, %v644
        %v656 = vpack.c.b16 %v647, %v646
        %v657 = vpack.c.b16 %v649, %v648
        %v658 = vpack.c.b16 %v651, %v650
        %v659 = vpack.c.b16 %v652, %v652
        %vm666 = vcmask 818176
        %v668 = vsel %vm666, %v587, 0
        %v671 = vsel %vm666, %v588, 0
        %v674 = vsel %vm666, %v589, 0
        %v677 = vsel %vm666, %v590, 0
        %v680 = vsel %vm666, %v591, 0
        %v683 = vsel %vm666, %v592, 0
        %v686 = vsel %vm666, %v593, 0
        %v689 = vsel %vm666, %v594, 0
        %v692 = vsel %vm666, %v595, 0
        %v695 = vsel %vm666, %v596, 0
        %v698 = vsel %vm666, %v597, 0
        %v701 = vsel %vm666, %v598, 0
        %v704 = vsel %vm666, %v599, 0
        %v707 = vsel %vm666, %v600, 0
        %v710 = vsel %vm666, %v601, 0
        %v713 = vsel %vm666, %v602, 0
        %v716 = vsel %vm666, %v603, 0
        %v719 = vsel %vm666, %v604, 0
        %v722 = vsel %vm666, %v605, 0
        %v725 = vsel %vm666, %v606, 0
        %v728 = vsel %vm666, %v607, 0
        %v731 = vsel %vm666, %v608, 0
        %v734 = vsel %vm666, %v609, 0
        %v737 = vsel %vm666, %v610, 0
        %v740 = vsel %vm666, %v611, 0
        %v743 = vsel %vm666, %v612, 0
        %v746 = vsel %vm666, %v613, 0
        %v749 = vsel %vm666, %v614, 0
        %v752 = vsel %vm666, %v615, 0
        %v755 = vsel %vm666, %v616, 0
        %v758 = vsel %vm666, %v617, 0
        %v761 = vsel %vm666, %v618, 0
        %v764 = vsel %vm666, %v619, 0
        %v767 = vsel %vm666, %v620, 0
        %v770 = vsel %vm666, %v621, 0
        %v773 = vsel %vm666, %v622, 0
        %v776 = vsel %vm666, %v623, 0
        %v779 = vsel %vm666, %v624, 0
        %v782 = vsel %vm666, %v625, 0
        %v785 = vsel %vm666, %v626, 0
        %vm787 = vcmask 1041408
        %v789 = vsel %vm787, %v659, 0
        %791 = vmatprep.subr.bf16.mxu0 0
        %792 = vmatpush1.bf16.msra.mxu0 %v653
        %793 = vmatprep.subr.bf16.mxu0 0
        %794 = vmatpush1.bf16.msra.mxu0 %v654
        %795 = vmatprep.subr.bf16.mxu0 0
        %796 = vmatpush1.bf16.msra.mxu0 %v655
        %797 = vmatprep.subr.bf16.mxu0 0
        %798 = vmatpush1.bf16.msra.mxu0 %v656
        %799 = vmatprep.subr.bf16.mxu0 0
        %800 = vmatpush1.bf16.msra.mxu0 %v657
        %801 = vmatprep.subr.bf16.mxu0 0
        %802 = vmatpush1.bf16.msra.mxu0 %v658
        %803 = vmatprep.subr.bf16.mxu0 0
        %804 = vmatpush1.bf16.msra.mxu0 %v789
        %805 = vmatprep.subr.bf16.mxu0 0
        %806 = vmatpush1.bf16.msra.mxu0 0
        %807 = vmatprep.subr.bf16.mxu0 0
        %808 = vmatpush1.bf16.msra.mxu0 0
        %809 = vmatprep.subr.bf16.mxu0 0
        %810 = vmatpush1.bf16.msra.mxu0 0
        %811 = vmatprep.subr.bf16.mxu0 0
        %812 = vmatpush1.bf16.msra.mxu0 0
        %813 = vmatprep.subr.bf16.mxu0 0
        %814 = vmatpush1.bf16.msra.mxu0 0
        %815 = vmatprep.subr.bf16.mxu0 0
        %816 = vmatpush1.bf16.msra.mxu0 0
        %817 = vmatprep.subr.bf16.mxu0 0
        %818 = vmatpush1.bf16.msra.mxu0 0
        %819 = vmatprep.subr.bf16.mxu0 0
        %820 = vmatpush1.bf16.msra.mxu0 0
        %821 = vmatprep.subr.bf16.mxu0 0
        %822 = vmatpush1.bf16.msra.mxu0 0
        %823 = vmatprep.mubr.bf16.mxu0 0
        %824 = vmatmul.mubr.bf16.gmra.mrb[0].mxu0 %v668
        %v825 = vpop.f32.mrb[0].mxu0
        %v826 = vadd.f32 %v425, %v825
        %v827 = vpop.f32.mrb[0].mxu0
        %v828 = vpop.f32.mrb[0].mxu0
        %v829 = vadd.f32 %v425, %v828
        %v830 = vpop.f32.mrb[0].mxu0
        %831 = vmatprep.mubr.bf16.mxu0 0
        %832 = vmatmul.mubr.bf16.gmra.mrb[0].mxu0 %v671
        %v833 = vpop.f32.mrb[0].mxu0
        %v834 = vadd.f32 %v425, %v833
        %v835 = vpop.f32.mrb[0].mxu0
        %v836 = vpop.f32.mrb[0].mxu0
        %v837 = vadd.f32 %v425, %v836
        %v838 = vpop.f32.mrb[0].mxu0
        %839 = vmatprep.mubr.bf16.mxu0 0
        %840 = vmatmul.mubr.bf16.gmra.mrb[0].mxu0 %v674
        %v841 = vpop.f32.mrb[0].mxu0
        %v842 = vadd.f32 %v425, %v841
        %v843 = vpop.f32.mrb[0].mxu0
        %v844 = vpop.f32.mrb[0].mxu0
        %v845 = vadd.f32 %v425, %v844
        %v846 = vpop.f32.mrb[0].mxu0
        %847 = vmatprep.mubr.bf16.mxu0 0
        %848 = vmatmul.mubr.bf16.gmra.mrb[0].mxu0 %v677
        %v849 = vpop.f32.mrb[0].mxu0
        %v850 = vadd.f32 %v425, %v849
        %v851 = vpop.f32.mrb[0].mxu0
        %v852 = vpop.f32.mrb[0].mxu0
        %v853 = vadd.f32 %v425, %v852
        %v854 = vpop.f32.mrb[0].mxu0
        %855 = vmatprep.mubr.bf16.mxu0 0
        %856 = vmatmul.mubr.bf16.gmra.mrb[0].mxu0 %v680
        %v857 = vpop.f32.mrb[0].mxu0
        %v858 = vadd.f32 %v425, %v857
        %v859 = vpop.f32.mrb[0].mxu0
        %v860 = vpop.f32.mrb[0].mxu0
        %v861 = vadd.f32 %v425, %v860
        %v862 = vpop.f32.mrb[0].mxu0
        %863 = vmatprep.mubr.bf16.mxu0 0
        %864 = vmatmul.mubr.bf16.gmra.mrb[0].mxu0 %v683
        %v865 = vpop.f32.mrb[0].mxu0
        %v866 = vadd.f32 %v425, %v865
        %v867 = vpop.f32.mrb[0].mxu0
        %v868 = vpop.f32.mrb[0].mxu0
        %v869 = vadd.f32 %v425, %v868
        %v870 = vpop.f32.mrb[0].mxu0
        %871 = vmatprep.mubr.bf16.mxu0 0
        %872 = vmatmul.mubr.bf16.gmra.mrb[0].mxu0 %v686
        %v873 = vpop.f32.mrb[0].mxu0
        %v874 = vadd.f32 %v425, %v873
        %v875 = vpop.f32.mrb[0].mxu0
        %v876 = vpop.f32.mrb[0].mxu0
        %v877 = vadd.f32 %v425, %v876
        %v878 = vpop.f32.mrb[0].mxu0
        %879 = vmatprep.mubr.bf16.mxu0 0
        %880 = vmatmul.mubr.bf16.gmra.mrb[0].mxu0 %v689
        %v881 = vpop.f32.mrb[0].mxu0
        %v882 = vadd.f32 %v425, %v881
        %v883 = vpop.f32.mrb[0].mxu0
        %v884 = vpop.f32.mrb[0].mxu0
        %v885 = vadd.f32 %v425, %v884
        %v886 = vpop.f32.mrb[0].mxu0
        %887 = vmatprep.mubr.bf16.mxu0 0
        %888 = vmatmul.mubr.bf16.gmra.mrb[0].mxu0 %v692
        %v889 = vpop.f32.mrb[0].mxu0
        %v890 = vadd.f32 %v425, %v889
        %v891 = vpop.f32.mrb[0].mxu0
        %v892 = vpop.f32.mrb[0].mxu0
        %v893 = vadd.f32 %v425, %v892
        %v894 = vpop.f32.mrb[0].mxu0
        %895 = vmatprep.mubr.bf16.mxu0 0
        %896 = vmatmul.mubr.bf16.gmra.mrb[0].mxu0 %v695
        %v897 = vpop.f32.mrb[0].mxu0
        %v898 = vadd.f32 %v425, %v897
        %v899 = vpop.f32.mrb[0].mxu0
        %v900 = vpop.f32.mrb[0].mxu0
        %v901 = vadd.f32 %v425, %v900
        %v902 = vpop.f32.mrb[0].mxu0
        %903 = vmatprep.mubr.bf16.mxu0 0
        %904 = vmatmul.mubr.bf16.gmra.mrb[0].mxu0 %v698
        %v905 = vpop.f32.mrb[0].mxu0
        %v906 = vadd.f32 %v425, %v905
        %v907 = vpop.f32.mrb[0].mxu0
        %v908 = vpop.f32.mrb[0].mxu0
        %v909 = vadd.f32 %v425, %v908
        %v910 = vpop.f32.mrb[0].mxu0
        %911 = vmatprep.mubr.bf16.mxu0 0
        %912 = vmatmul.mubr.bf16.gmra.mrb[0].mxu0 %v701
        %v913 = vpop.f32.mrb[0].mxu0
        %v914 = vadd.f32 %v425, %v913
        %v915 = vpop.f32.mrb[0].mxu0
        %v916 = vpop.f32.mrb[0].mxu0
        %v917 = vadd.f32 %v425, %v916
        %v918 = vpop.f32.mrb[0].mxu0
        %919 = vmatprep.mubr.bf16.mxu0 0
        %920 = vmatmul.mubr.bf16.gmra.mrb[0].mxu0 %v704
        %v921 = vpop.f32.mrb[0].mxu0
        %v922 = vadd.f32 %v425, %v921
        %v923 = vpop.f32.mrb[0].mxu0
        %v924 = vpop.f32.mrb[0].mxu0
        %v925 = vadd.f32 %v425, %v924
        %v926 = vpop.f32.mrb[0].mxu0
        %927 = vmatprep.mubr.bf16.mxu0 0
        %928 = vmatmul.mubr.bf16.gmra.mrb[0].mxu0 %v707
        %v929 = vpop.f32.mrb[0].mxu0
        %v930 = vadd.f32 %v425, %v929
        %v931 = vpop.f32.mrb[0].mxu0
        %v932 = vpop.f32.mrb[0].mxu0
        %v933 = vadd.f32 %v425, %v932
        %v934 = vpop.f32.mrb[0].mxu0
        %935 = vmatprep.mubr.bf16.mxu0 0
        %936 = vmatmul.mubr.bf16.gmra.mrb[0].mxu0 %v710
        %v937 = vpop.f32.mrb[0].mxu0
        %v938 = vadd.f32 %v425, %v937
        %v939 = vpop.f32.mrb[0].mxu0
        %v940 = vpop.f32.mrb[0].mxu0
        %v941 = vadd.f32 %v425, %v940
        %v942 = vpop.f32.mrb[0].mxu0
        %943 = vmatprep.mubr.bf16.mxu0 0
        %944 = vmatmul.mubr.bf16.gmra.mrb[0].mxu0 %v713
        %v945 = vpop.f32.mrb[0].mxu0
        %v946 = vadd.f32 %v425, %v945
        %v947 = vpop.f32.mrb[0].mxu0
        %v948 = vpop.f32.mrb[0].mxu0
        %v949 = vadd.f32 %v425, %v948
        %v950 = vpop.f32.mrb[0].mxu0
        %951 = vmatprep.mubr.bf16.mxu0 0
        %952 = vmatmul.mubr.bf16.gmra.mrb[0].mxu0 %v716
        %v953 = vpop.f32.mrb[0].mxu0
        %v954 = vadd.f32 %v425, %v953
        %v955 = vpop.f32.mrb[0].mxu0
        %v956 = vpop.f32.mrb[0].mxu0
        %v957 = vadd.f32 %v425, %v956
        %v958 = vpop.f32.mrb[0].mxu0
        %959 = vmatprep.mubr.bf16.mxu0 0
        %960 = vmatmul.mubr.bf16.gmra.mrb[0].mxu0 %v719
        %v961 = vpop.f32.mrb[0].mxu0
        %v962 = vadd.f32 %v425, %v961
        %v963 = vpop.f32.mrb[0].mxu0
        %v964 = vpop.f32.mrb[0].mxu0
        %v965 = vadd.f32 %v425, %v964
        %v966 = vpop.f32.mrb[0].mxu0
        %967 = vmatprep.mubr.bf16.mxu0 0
        %968 = vmatmul.mubr.bf16.gmra.mrb[0].mxu0 %v722
        %v969 = vpop.f32.mrb[0].mxu0
        %v970 = vadd.f32 %v425, %v969
        %v971 = vpop.f32.mrb[0].mxu0
        %v972 = vpop.f32.mrb[0].mxu0
        %v973 = vadd.f32 %v425, %v972
        %v974 = vpop.f32.mrb[0].mxu0
        %975 = vmatprep.mubr.bf16.mxu0 0
        %976 = vmatmul.mubr.bf16.gmra.mrb[0].mxu0 %v725
        %v977 = vpop.f32.mrb[0].mxu0
        %v978 = vadd.f32 %v425, %v977
        %v979 = vpop.f32.mrb[0].mxu0
        %v980 = vpop.f32.mrb[0].mxu0
        %v981 = vadd.f32 %v425, %v980
        %v982 = vpop.f32.mrb[0].mxu0
        %983 = vmatprep.mubr.bf16.mxu0 0
        %984 = vmatmul.mubr.bf16.gmra.mrb[0].mxu0 %v728
        %v985 = vpop.f32.mrb[0].mxu0
        %v986 = vadd.f32 %v425, %v985
        %v987 = vpop.f32.mrb[0].mxu0
        %v988 = vpop.f32.mrb[0].mxu0
        %v989 = vadd.f32 %v425, %v988
        %v990 = vpop.f32.mrb[0].mxu0
        %991 = vmatprep.mubr.bf16.mxu0 0
        %992 = vmatmul.mubr.bf16.gmra.mrb[0].mxu0 %v731
        %v993 = vpop.f32.mrb[0].mxu0
        %v994 = vadd.f32 %v425, %v993
        %v995 = vpop.f32.mrb[0].mxu0
        %v996 = vpop.f32.mrb[0].mxu0
        %v997 = vadd.f32 %v425, %v996
        %v998 = vpop.f32.mrb[0].mxu0
        %999 = vmatprep.mubr.bf16.mxu0 0
        %1000 = vmatmul.mubr.bf16.gmra.mrb[0].mxu0 %v734
        %v1001 = vpop.f32.mrb[0].mxu0
        %v1002 = vadd.f32 %v425, %v1001
        %v1003 = vpop.f32.mrb[0].mxu0
        %v1004 = vpop.f32.mrb[0].mxu0
        %v1005 = vadd.f32 %v425, %v1004
        %v1006 = vpop.f32.mrb[0].mxu0
        %1007 = vmatprep.mubr.bf16.mxu0 0
        %1008 = vmatmul.mubr.bf16.gmra.mrb[0].mxu0 %v737
        %v1009 = vpop.f32.mrb[0].mxu0
        %v1010 = vadd.f32 %v425, %v1009
        %v1011 = vpop.f32.mrb[0].mxu0
        %v1012 = vpop.f32.mrb[0].mxu0
        %v1013 = vadd.f32 %v425, %v1012
        %v1014 = vpop.f32.mrb[0].mxu0
        %1015 = vmatprep.mubr.bf16.mxu0 0
        %1016 = vmatmul.mubr.bf16.gmra.mrb[0].mxu0 %v740
        %v1017 = vpop.f32.mrb[0].mxu0
        %v1018 = vadd.f32 %v425, %v1017
        %v1019 = vpop.f32.mrb[0].mxu0
        %v1020 = vpop.f32.mrb[0].mxu0
        %v1021 = vadd.f32 %v425, %v1020
        %v1022 = vpop.f32.mrb[0].mxu0
        %1023 = vmatprep.mubr.bf16.mxu0 0
        %1024 = vmatmul.mubr.bf16.gmra.mrb[0].mxu0 %v743
        %v1025 = vpop.f32.mrb[0].mxu0
        %v1026 = vadd.f32 %v425, %v1025
        %v1027 = vpop.f32.mrb[0].mxu0
        %v1028 = vpop.f32.mrb[0].mxu0
        %v1029 = vadd.f32 %v425, %v1028
        %v1030 = vpop.f32.mrb[0].mxu0
        %1031 = vmatprep.mubr.bf16.mxu0 0
        %1032 = vmatmul.mubr.bf16.gmra.mrb[0].mxu0 %v746
        %v1033 = vpop.f32.mrb[0].mxu0
        %v1034 = vadd.f32 %v425, %v1033
        %v1035 = vpop.f32.mrb[0].mxu0
        %v1036 = vpop.f32.mrb[0].mxu0
        %v1037 = vadd.f32 %v425, %v1036
        %v1038 = vpop.f32.mrb[0].mxu0
        %1039 = vmatprep.mubr.bf16.mxu0 0
        %1040 = vmatmul.mubr.bf16.gmra.mrb[0].mxu0 %v749
        %v1041 = vpop.f32.mrb[0].mxu0
        %v1042 = vadd.f32 %v425, %v1041
        %v1043 = vpop.f32.mrb[0].mxu0
        %v1044 = vpop.f32.mrb[0].mxu0
        %v1045 = vadd.f32 %v425, %v1044
        %v1046 = vpop.f32.mrb[0].mxu0
        %1047 = vmatprep.mubr.bf16.mxu0 0
        %1048 = vmatmul.mubr.bf16.gmra.mrb[0].mxu0 %v752
        %v1049 = vpop.f32.mrb[0].mxu0
        %v1050 = vadd.f32 %v425, %v1049
        %v1051 = vpop.f32.mrb[0].mxu0
        %v1052 = vpop.f32.mrb[0].mxu0
        %v1053 = vadd.f32 %v425, %v1052
        %v1054 = vpop.f32.mrb[0].mxu0
        %1055 = vmatprep.mubr.bf16.mxu0 0
        %1056 = vmatmul.mubr.bf16.gmra.mrb[0].mxu0 %v755
        %v1057 = vpop.f32.mrb[0].mxu0
        %v1058 = vadd.f32 %v425, %v1057
        %v1059 = vpop.f32.mrb[0].mxu0
        %v1060 = vpop.f32.mrb[0].mxu0
        %v1061 = vadd.f32 %v425, %v1060
        %v1062 = vpop.f32.mrb[0].mxu0
        %1063 = vmatprep.mubr.bf16.mxu0 0
        %1064 = vmatmul.mubr.bf16.gmra.mrb[0].mxu0 %v758
        %v1065 = vpop.f32.mrb[0].mxu0
        %v1066 = vadd.f32 %v425, %v1065
        %v1067 = vpop.f32.mrb[0].mxu0
        %v1068 = vpop.f32.mrb[0].mxu0
        %v1069 = vadd.f32 %v425, %v1068
        %v1070 = vpop.f32.mrb[0].mxu0
        %1071 = vmatprep.mubr.bf16.mxu0 0
        %1072 = vmatmul.mubr.bf16.gmra.mrb[0].mxu0 %v761
        %v1073 = vpop.f32.mrb[0].mxu0
        %v1074 = vadd.f32 %v425, %v1073
        %v1075 = vpop.f32.mrb[0].mxu0
        %v1076 = vpop.f32.mrb[0].mxu0
        %v1077 = vadd.f32 %v425, %v1076
        %v1078 = vpop.f32.mrb[0].mxu0
        %1079 = vmatprep.mubr.bf16.mxu0 0
        %1080 = vmatmul.mubr.bf16.gmra.mrb[0].mxu0 %v764
        %v1081 = vpop.f32.mrb[0].mxu0
        %v1082 = vadd.f32 %v425, %v1081
        %v1083 = vpop.f32.mrb[0].mxu0
        %v1084 = vpop.f32.mrb[0].mxu0
        %v1085 = vadd.f32 %v425, %v1084
        %v1086 = vpop.f32.mrb[0].mxu0
        %1087 = vmatprep.mubr.bf16.mxu0 0
        %1088 = vmatmul.mubr.bf16.gmra.mrb[0].mxu0 %v767
        %v1089 = vpop.f32.mrb[0].mxu0
        %v1090 = vadd.f32 %v425, %v1089
        %v1091 = vpop.f32.mrb[0].mxu0
        %v1092 = vpop.f32.mrb[0].mxu0
        %v1093 = vadd.f32 %v425, %v1092
        %v1094 = vpop.f32.mrb[0].mxu0
        %1095 = vmatprep.mubr.bf16.mxu0 0
        %1096 = vmatmul.mubr.bf16.gmra.mrb[0].mxu0 %v770
        %v1097 = vpop.f32.mrb[0].mxu0
        %v1098 = vadd.f32 %v425, %v1097
        %v1099 = vpop.f32.mrb[0].mxu0
        %v1100 = vpop.f32.mrb[0].mxu0
        %v1101 = vadd.f32 %v425, %v1100
        %v1102 = vpop.f32.mrb[0].mxu0
        %1103 = vmatprep.mubr.bf16.mxu0 0
        %1104 = vmatmul.mubr.bf16.gmra.mrb[0].mxu0 %v773
        %v1105 = vpop.f32.mrb[0].mxu0
        %v1106 = vadd.f32 %v425, %v1105
        %v1107 = vpop.f32.mrb[0].mxu0
        %v1108 = vpop.f32.mrb[0].mxu0
        %v1109 = vadd.f32 %v425, %v1108
        %v1110 = vpop.f32.mrb[0].mxu0
        %1111 = vmatprep.mubr.bf16.mxu0 0
        %1112 = vmatmul.mubr.bf16.gmra.mrb[0].mxu0 %v776
        %v1113 = vpop.f32.mrb[0].mxu0
        %v1114 = vadd.f32 %v425, %v1113
        %v1115 = vpop.f32.mrb[0].mxu0
        %v1116 = vpop.f32.mrb[0].mxu0
        %v1117 = vadd.f32 %v425, %v1116
        %v1118 = vpop.f32.mrb[0].mxu0
        %1119 = vmatprep.mubr.bf16.mxu0 0
        %1120 = vmatmul.mubr.bf16.gmra.mrb[0].mxu0 %v779
        %v1121 = vpop.f32.mrb[0].mxu0
        %v1122 = vadd.f32 %v425, %v1121
        %v1123 = vpop.f32.mrb[0].mxu0
        %v1124 = vpop.f32.mrb[0].mxu0
        %v1125 = vadd.f32 %v425, %v1124
        %v1126 = vpop.f32.mrb[0].mxu0
        %1127 = vmatprep.mubr.bf16.mxu0 0
        %1128 = vmatmul.mubr.bf16.gmra.mrb[0].mxu0 %v782
        %v1129 = vpop.f32.mrb[0].mxu0
        %v1130 = vadd.f32 %v425, %v1129
        %v1131 = vpop.f32.mrb[0].mxu0
        %v1132 = vpop.f32.mrb[0].mxu0
        %v1133 = vadd.f32 %v425, %v1132
        %v1134 = vpop.f32.mrb[0].mxu0
        %1135 = vmatprep.mubr.bf16.mxu0 0
        %1136 = vmatmul.mubr.bf16.gmra.mrb[0].mxu0 %v785
        %v1137 = vpop.f32.mrb[0].mxu0
        %v1138 = vadd.f32 %v425, %v1137
        %v1139 = vpop.f32.mrb[0].mxu0
        %v1140 = vpop.f32.mrb[0].mxu0
        %v1141 = vadd.f32 %v425, %v1140
        %v1142 = vpop.f32.mrb[0].mxu0
        %1143 = vdwg.mxu0
        %v1144 = vmax.f32 %v826, 0.0
        %v1145 = vmax.f32 %v829, 0.0
        %v1146 = vmax.f32 %v834, 0.0
        %v1147 = vmax.f32 %v837, 0.0
        %v1148 = vmax.f32 %v842, 0.0
        %v1149 = vmax.f32 %v845, 0.0
        %v1150 = vmax.f32 %v850, 0.0
        %v1151 = vmax.f32 %v853, 0.0
        %v1152 = vmax.f32 %v858, 0.0
        %v1153 = vmax.f32 %v861, 0.0
        %v1154 = vmax.f32 %v866, 0.0
        %v1155 = vmax.f32 %v869, 0.0
        %v1156 = vmax.f32 %v874, 0.0
        %v1157 = vmax.f32 %v877, 0.0
        %v1158 = vmax.f32 %v882, 0.0
        %v1159 = vmax.f32 %v885, 0.0
        %v1160 = vmax.f32 %v890, 0.0
        %v1161 = vmax.f32 %v893, 0.0
        %v1162 = vmax.f32 %v898, 0.0
        %v1163 = vmax.f32 %v901, 0.0
        %v1164 = vmax.f32 %v906, 0.0
        %v1165 = vmax.f32 %v909, 0.0
        %v1166 = vmax.f32 %v914, 0.0
        %v1167 = vmax.f32 %v917, 0.0
        %v1168 = vmax.f32 %v922, 0.0
        %v1169 = vmax.f32 %v925, 0.0
        %v1170 = vmax.f32 %v930, 0.0
        %v1171 = vmax.f32 %v933, 0.0
        %v1172 = vmax.f32 %v938, 0.0
        %v1173 = vmax.f32 %v941, 0.0
        %v1174 = vmax.f32 %v946, 0.0
        %v1175 = vmax.f32 %v949, 0.0
        %v1176 = vmax.f32 %v954, 0.0
        %v1177 = vmax.f32 %v957, 0.0
        %v1178 = vmax.f32 %v962, 0.0
        %v1179 = vmax.f32 %v965, 0.0
        %v1180 = vmax.f32 %v970, 0.0
        %v1181 = vmax.f32 %v973, 0.0
        %v1182 = vmax.f32 %v978, 0.0
        %v1183 = vmax.f32 %v981, 0.0
        %v1184 = vmax.f32 %v986, 0.0
        %v1185 = vmax.f32 %v989, 0.0
        %v1186 = vmax.f32 %v994, 0.0
        %v1187 = vmax.f32 %v997, 0.0
        %v1188 = vmax.f32 %v1002, 0.0
        %v1189 = vmax.f32 %v1005, 0.0
        %v1190 = vmax.f32 %v1010, 0.0
        %v1191 = vmax.f32 %v1013, 0.0
        %v1192 = vmax.f32 %v1018, 0.0
        %v1193 = vmax.f32 %v1021, 0.0
        %v1194 = vmax.f32 %v1026, 0.0
        %v1195 = vmax.f32 %v1029, 0.0
        %v1196 = vmax.f32 %v1034, 0.0
        %v1197 = vmax.f32 %v1037, 0.0
        %v1198 = vmax.f32 %v1042, 0.0
        %v1199 = vmax.f32 %v1045, 0.0
        %v1200 = vmax.f32 %v1050, 0.0
        %v1201 = vmax.f32 %v1053, 0.0
        %v1202 = vmax.f32 %v1058, 0.0
        %v1203 = vmax.f32 %v1061, 0.0
        %v1204 = vmax.f32 %v1066, 0.0
        %v1205 = vmax.f32 %v1069, 0.0
        %v1206 = vmax.f32 %v1074, 0.0
        %v1207 = vmax.f32 %v1077, 0.0
        %v1208 = vmax.f32 %v1082, 0.0
        %v1209 = vmax.f32 %v1085, 0.0
        %v1210 = vmax.f32 %v1090, 0.0
        %v1211 = vmax.f32 %v1093, 0.0
        %v1212 = vmax.f32 %v1098, 0.0
        %v1213 = vmax.f32 %v1101, 0.0
        %v1214 = vmax.f32 %v1106, 0.0
        %v1215 = vmax.f32 %v1109, 0.0
        %v1216 = vmax.f32 %v1114, 0.0
        %v1217 = vmax.f32 %v1117, 0.0
        %v1218 = vmax.f32 %v1122, 0.0
        %v1219 = vmax.f32 %v1125, 0.0
        %v1220 = vmax.f32 %v1130, 0.0
        %v1221 = vmax.f32 %v1133, 0.0
        %v1222 = vmax.f32 %v1138, 0.0
        %v1223 = vmax.f32 %v1141, 0.0
        %vm1224 = vcmask 523264
        %v1225 = vsel %vm1224, %v1144, -inf
        %v1226 = vsel %vm1224, %v1148, -inf
        %v1227 = vmax.f32 %v1225, %v1226
        %v1228 = vsel %vm1224, %v1145, -inf
        %v1229 = vsel %vm1224, %v1149, -inf
        %v1230 = vmax.f32 %v1228, %v1229
        %v1231 = vsel %vm1224, %v1146, -inf
        %v1232 = vsel %vm1224, %v1150, -inf
        %v1233 = vmax.f32 %v1231, %v1232
        %v1234 = vsel %vm1224, %v1147, -inf
        %v1235 = vsel %vm1224, %v1151, -inf
        %v1236 = vmax.f32 %v1234, %v1235
        %v1237 = vsel %vm1224, %v1152, -inf
        %v1238 = vsel %vm1224, %v1156, -inf
        %v1239 = vmax.f32 %v1237, %v1238
        %v1240 = vsel %vm1224, %v1153, -inf
        %v1241 = vsel %vm1224, %v1157, -inf
        %v1242 = vmax.f32 %v1240, %v1241
        %v1243 = vsel %vm1224, %v1154, -inf
        %v1244 = vsel %vm1224, %v1158, -inf
        %v1245 = vmax.f32 %v1243, %v1244
        %v1246 = vsel %vm1224, %v1155, -inf
        %v1247 = vsel %vm1224, %v1159, -inf
        %v1248 = vmax.f32 %v1246, %v1247
        %v1249 = vsel %vm1224, %v1160, -inf
        %v1250 = vsel %vm1224, %v1164, -inf
        %v1251 = vmax.f32 %v1249, %v1250
        %v1252 = vsel %vm1224, %v1161, -inf
        %v1253 = vsel %vm1224, %v1165, -inf
        %v1254 = vmax.f32 %v1252, %v1253
        %v1255 = vsel %vm1224, %v1162, -inf
        %v1256 = vsel %vm1224, %v1166, -inf
        %v1257 = vmax.f32 %v1255, %v1256
        %v1258 = vsel %vm1224, %v1163, -inf
        %v1259 = vsel %vm1224, %v1167, -inf
        %v1260 = vmax.f32 %v1258, %v1259
        %v1261 = vsel %vm1224, %v1168, -inf
        %v1262 = vsel %vm1224, %v1172, -inf
        %v1263 = vmax.f32 %v1261, %v1262
        %v1264 = vsel %vm1224, %v1169, -inf
        %v1265 = vsel %vm1224, %v1173, -inf
        %v1266 = vmax.f32 %v1264, %v1265
        %v1267 = vsel %vm1224, %v1170, -inf
        %v1268 = vsel %vm1224, %v1174, -inf
        %v1269 = vmax.f32 %v1267, %v1268
        %v1270 = vsel %vm1224, %v1171, -inf
        %v1271 = vsel %vm1224, %v1175, -inf
        %v1272 = vmax.f32 %v1270, %v1271
        %v1273 = vsel %vm1224, %v1176, -inf
        %v1274 = vsel %vm1224, %v1180, -inf
        %v1275 = vmax.f32 %v1273, %v1274
        %v1276 = vsel %vm1224, %v1177, -inf
        %v1277 = vsel %vm1224, %v1181, -inf
        %v1278 = vmax.f32 %v1276, %v1277
        %v1279 = vsel %vm1224, %v1178, -inf
        %v1280 = vsel %vm1224, %v1182, -inf
        %v1281 = vmax.f32 %v1279, %v1280
        %v1282 = vsel %vm1224, %v1179, -inf
        %v1283 = vsel %vm1224, %v1183, -inf
        %v1284 = vmax.f32 %v1282, %v1283
        %v1285 = vsel %vm1224, %v1184, -inf
        %v1286 = vsel %vm1224, %v1188, -inf
        %v1287 = vmax.f32 %v1285, %v1286
        %v1288 = vsel %vm1224, %v1185, -inf
        %v1289 = vsel %vm1224, %v1189, -inf
        %v1290 = vmax.f32 %v1288, %v1289
        %v1291 = vsel %vm1224, %v1186, -inf
        %v1292 = vsel %vm1224, %v1190, -inf
        %v1293 = vmax.f32 %v1291, %v1292
        %v1294 = vsel %vm1224, %v1187, -inf
        %v1295 = vsel %vm1224, %v1191, -inf
        %v1296 = vmax.f32 %v1294, %v1295
        %v1297 = vsel %vm1224, %v1192, -inf
        %v1298 = vsel %vm1224, %v1196, -inf
        %v1299 = vmax.f32 %v1297, %v1298
        %v1300 = vsel %vm1224, %v1193, -inf
        %v1301 = vsel %vm1224, %v1197, -inf
        %v1302 = vmax.f32 %v1300, %v1301
        %v1303 = vsel %vm1224, %v1194, -inf
        %v1304 = vsel %vm1224, %v1198, -inf
        %v1305 = vmax.f32 %v1303, %v1304
        %v1306 = vsel %vm1224, %v1195, -inf
        %v1307 = vsel %vm1224, %v1199, -inf
        %v1308 = vmax.f32 %v1306, %v1307
        %v1309 = vsel %vm1224, %v1200, -inf
        %v1310 = vsel %vm1224, %v1204, -inf
        %v1311 = vmax.f32 %v1309, %v1310
        %v1312 = vsel %vm1224, %v1201, -inf
        %v1313 = vsel %vm1224, %v1205, -inf
        %v1314 = vmax.f32 %v1312, %v1313
        %v1315 = vsel %vm1224, %v1202, -inf
        %v1316 = vsel %vm1224, %v1206, -inf
        %v1317 = vmax.f32 %v1315, %v1316
        %v1318 = vsel %vm1224, %v1203, -inf
        %v1319 = vsel %vm1224, %v1207, -inf
        %v1320 = vmax.f32 %v1318, %v1319
        %v1321 = vsel %vm1224, %v1208, -inf
        %v1322 = vsel %vm1224, %v1212, -inf
        %v1323 = vmax.f32 %v1321, %v1322
        %v1324 = vsel %vm1224, %v1209, -inf
        %v1325 = vsel %vm1224, %v1213, -inf
        %v1326 = vmax.f32 %v1324, %v1325
        %v1327 = vsel %vm1224, %v1210, -inf
        %v1328 = vsel %vm1224, %v1214, -inf
        %v1329 = vmax.f32 %v1327, %v1328
        %v1330 = vsel %vm1224, %v1211, -inf
        %v1331 = vsel %vm1224, %v1215, -inf
        %v1332 = vmax.f32 %v1330, %v1331
        %v1333 = vsel %vm1224, %v1216, -inf
        %v1334 = vsel %vm1224, %v1220, -inf
        %v1335 = vmax.f32 %v1333, %v1334
        %v1336 = vsel %vm1224, %v1217, -inf
        %v1337 = vsel %vm1224, %v1221, -inf
        %v1338 = vmax.f32 %v1336, %v1337
        %v1339 = vsel %vm1224, %v1218, -inf
        %v1340 = vsel %vm1224, %v1222, -inf
        %v1341 = vmax.f32 %v1339, %v1340
        %v1342 = vsel %vm1224, %v1219, -inf
        %v1343 = vsel %vm1224, %v1223, -inf
        %v1344 = vmax.f32 %v1342, %v1343
        %v1345 = vpack.c.bf16 %v1230, %v1227
        %v1346 = vpack.c.bf16 %v1236, %v1233
        %v1347 = vpack.c.bf16 %v1242, %v1239
        %v1348 = vpack.c.bf16 %v1248, %v1245
        %v1349 = vpack.c.bf16 %v1254, %v1251
        %v1350 = vpack.c.bf16 %v1260, %v1257
        %v1351 = vpack.c.bf16 %v1266, %v1263
        %v1352 = vpack.c.bf16 %v1272, %v1269
        %v1353 = vpack.c.bf16 %v1278, %v1275
        %v1354 = vpack.c.bf16 %v1284, %v1281
        %v1355 = vpack.c.bf16 %v1290, %v1287
        %v1356 = vpack.c.bf16 %v1296, %v1293
        %v1357 = vpack.c.bf16 %v1302, %v1299
        %v1358 = vpack.c.bf16 %v1308, %v1305
        %v1359 = vpack.c.bf16 %v1314, %v1311
        %v1360 = vpack.c.bf16 %v1320, %v1317
        %v1361 = vpack.c.bf16 %v1326, %v1323
        %v1362 = vpack.c.bf16 %v1332, %v1329
        %v1363 = vpack.c.bf16 %v1338, %v1335
        %v1364 = vpack.c.bf16 %v1344, %v1341
        %v1365 = vld [vmem:[%s3] sm:$0xf]
        %v1366 = vld [vmem:[%s3 + $0x4] sm:$0xf]
        %v1367 = vld [vmem:[%s3 + $0x8] sm:$0xf]
        %v1368 = vld [vmem:[%s3 + $0xc] sm:$0xf]
        %v1369 = vld [vmem:[%s3 + $0x10] sm:$0xf]
        %v1370 = vld [vmem:[%s3 + $0x14] sm:$0xf]
        %v1371 = vld [vmem:[%s3 + $0x18] sm:$0xf]
        %v1372 = vld [vmem:[%s3 + $0x1c] sm:$0xf]
        %s1373 = scalar_lea.vmem %s3, 32
        %v1374 = vld [vmem:[%s1373] sm:$0xf]
        %v1375 = vld [vmem:[%s1373 + $0x4] sm:$0xf]
        %v1376 = vld [vmem:[%s1373 + $0x8] sm:$0xf]
        %v1377 = vld [vmem:[%s1373 + $0xc] sm:$0xf]
        %v1378 = vld [vmem:[%s1373 + $0x10] sm:$0xf]
        %v1379 = vld [vmem:[%s1373 + $0x14] sm:$0xf]
        %v1380 = vld [vmem:[%s1373 + $0x18] sm:$0xf]
        %v1381 = vld [vmem:[%s1373 + $0x1c] sm:$0xf]
        %v1390 = vunpack.c.l.b16 %v1374
        %v1391 = vunpack.c.l.b16 %v1375
        %v1392 = vunpack.c.l.b16 %v1376
        %v1393 = vunpack.c.l.b16 %v1377
        %v1394 = vunpack.c.l.b16 %v1378
        %v1395 = vunpack.c.l.b16 %v1379
        %v1396 = vunpack.c.l.b16 %v1380
        %v1397 = vunpack.c.l.b16 %v1381
        %v1398 = vpack.c.b16 %v1391, %v1390
        %v1399 = vpack.c.b16 %v1393, %v1392
        %v1400 = vpack.c.b16 %v1395, %v1394
        %v1401 = vpack.c.b16 %v1397, %v1396
        %v1407 = vsel %vm1224, %v1347, 0
        %v1410 = vsel %vm1224, %v1348, 0
        %1412 = vmatprep.subr.bf16.mxu0 0
        %1413 = vmatpush1.bf16.msra.mxu0 %v1398
        %1414 = vmatprep.subr.bf16.mxu0 0
        %1415 = vmatpush1.bf16.msra.mxu0 %v1399
        %1416 = vmatprep.subr.bf16.mxu0 0
        %1417 = vmatpush1.bf16.msra.mxu0 %v1400
        %1418 = vmatprep.subr.bf16.mxu0 0
        %1419 = vmatpush1.bf16.msra.mxu0 %v1401
        %1420 = vmatprep.subr.bf16.mxu0 0
        %1421 = vmatpush1.bf16.msra.mxu0 0
        %1422 = vmatprep.subr.bf16.mxu0 0
        %1423 = vmatpush1.bf16.msra.mxu0 0
        %1424 = vmatprep.subr.bf16.mxu0 0
        %1425 = vmatpush1.bf16.msra.mxu0 0
        %1426 = vmatprep.subr.bf16.mxu0 0
        %1427 = vmatpush1.bf16.msra.mxu0 0
        %1428 = vmatprep.subr.bf16.mxu0 0
        %1429 = vmatpush1.bf16.msra.mxu0 0
        %1430 = vmatprep.subr.bf16.mxu0 0
        %1431 = vmatpush1.bf16.msra.mxu0 0
        %1432 = vmatprep.subr.bf16.mxu0 0
        %1433 = vmatpush1.bf16.msra.mxu0 0
        %1434 = vmatprep.subr.bf16.mxu0 0
        %1435 = vmatpush1.bf16.msra.mxu0 0
        %1436 = vmatprep.subr.bf16.mxu0 0
        %1437 = vmatpush1.bf16.msra.mxu0 0
        %1438 = vmatprep.subr.bf16.mxu0 0
        %1439 = vmatpush1.bf16.msra.mxu0 0
        %1440 = vmatprep.subr.bf16.mxu0 0
        %1441 = vmatpush1.bf16.msra.mxu0 0
        %1442 = vmatprep.subr.bf16.mxu0 0
        %1443 = vmatpush1.bf16.msra.mxu0 0
        %1444 = vmatprep.mubr.bf16.mxu0 0
        %1445 = vmatmul.mubr.bf16.gmra.mrb[0].mxu0 %v1407
        %v1446 = vpop.f32.mrb[0].mxu0
        %v1447 = vadd.f32 0.0, %v1446
        %v1448 = vpop.f32.mrb[0].mxu0
        %v1449 = vpop.f32.mrb[0].mxu0
        %v1450 = vadd.f32 0.0, %v1449
        %v1451 = vpop.f32.mrb[0].mxu0
        %1452 = vmatprep.mubr.bf16.mxu0 0
        %1453 = vmatmul.mubr.bf16.gmra.mrb[0].mxu0 %v1410
        %v1454 = vpop.f32.mrb[0].mxu0
        %v1455 = vadd.f32 0.0, %v1454
        %v1456 = vpop.f32.mrb[0].mxu0
        %v1457 = vpop.f32.mrb[0].mxu0
        %v1458 = vadd.f32 0.0, %v1457
        %v1459 = vpop.f32.mrb[0].mxu0
        %1460 = vdwg.mxu0
        %v1469 = vunpack.c.l.b16 %v1365
        %v1470 = vunpack.c.l.b16 %v1366
        %v1471 = vunpack.c.l.b16 %v1367
        %v1472 = vunpack.c.l.b16 %v1368
        %v1473 = vunpack.c.l.b16 %v1369
        %v1474 = vunpack.c.l.b16 %v1370
        %v1475 = vunpack.c.l.b16 %v1371
        %v1476 = vunpack.c.l.b16 %v1372
        %v1477 = vpack.c.b16 %v1470, %v1469
        %v1478 = vpack.c.b16 %v1472, %v1471
        %v1479 = vpack.c.b16 %v1474, %v1473
        %v1480 = vpack.c.b16 %v1476, %v1475
        %v1486 = vsel %vm1224, %v1345, 0
        %v1489 = vsel %vm1224, %v1346, 0
        %1491 = vmatprep.subr.bf16.mxu0 0
        %1492 = vmatpush1.bf16.msra.mxu0 %v1477
        %1493 = vmatprep.subr.bf16.mxu0 0
        %1494 = vmatpush1.bf16.msra.mxu0 %v1478
        %1495 = vmatprep.subr.bf16.mxu0 0
        %1496 = vmatpush1.bf16.msra.mxu0 %v1479
        %1497 = vmatprep.subr.bf16.mxu0 0
        %1498 = vmatpush1.bf16.msra.mxu0 %v1480
        %1499 = vmatprep.subr.bf16.mxu0 0
        %1500 = vmatpush1.bf16.msra.mxu0 0
        %1501 = vmatprep.subr.bf16.mxu0 0
        %1502 = vmatpush1.bf16.msra.mxu0 0
        %1503 = vmatprep.subr.bf16.mxu0 0
        %1504 = vmatpush1.bf16.msra.mxu0 0
        %1505 = vmatprep.subr.bf16.mxu0 0
        %1506 = vmatpush1.bf16.msra.mxu0 0
        %1507 = vmatprep.subr.bf16.mxu0 0
        %1508 = vmatpush1.bf16.msra.mxu0 0
        %1509 = vmatprep.subr.bf16.mxu0 0
        %1510 = vmatpush1.bf16.msra.mxu0 0
        %1511 = vmatprep.subr.bf16.mxu0 0
        %1512 = vmatpush1.bf16.msra.mxu0 0
        %1513 = vmatprep.subr.bf16.mxu0 0
        %1514 = vmatpush1.bf16.msra.mxu0 0
        %1515 = vmatprep.subr.bf16.mxu0 0
        %1516 = vmatpush1.bf16.msra.mxu0 0
        %1517 = vmatprep.subr.bf16.mxu0 0
        %1518 = vmatpush1.bf16.msra.mxu0 0
        %1519 = vmatprep.subr.bf16.mxu0 0
        %1520 = vmatpush1.bf16.msra.mxu0 0
        %1521 = vmatprep.subr.bf16.mxu0 0
        %1522 = vmatpush1.bf16.msra.mxu0 0
        %1523 = vmatprep.mubr.bf16.mxu0 0
        %1524 = vmatmul.mubr.bf16.gmra.mrb[0].mxu0 %v1486
        %v1525 = vpop.f32.mrb[0].mxu0
        %v1526 = vadd.f32 %v1447, %v1525
        %v1527 = vpop.f32.mrb[0].mxu0
        %v1528 = vpop.f32.mrb[0].mxu0
        %v1529 = vadd.f32 %v1450, %v1528
        %v1530 = vpop.f32.mrb[0].mxu0
        %1531 = vmatprep.mubr.bf16.mxu0 0
        %1532 = vmatmul.mubr.bf16.gmra.mrb[0].mxu0 %v1489
        %v1533 = vpop.f32.mrb[0].mxu0
        %v1534 = vadd.f32 %v1455, %v1533
        %v1535 = vpop.f32.mrb[0].mxu0
        %v1536 = vpop.f32.mrb[0].mxu0
        %v1537 = vadd.f32 %v1458, %v1536
        %v1538 = vpop.f32.mrb[0].mxu0
        %1539 = vdwg.mxu0
        %s1540 = scalar_lea.vmem %s3, 64
        %v1541 = vld [vmem:[%s1540] sm:$0xf]
        %v1542 = vld [vmem:[%s1540 + $0x4] sm:$0xf]
        %v1543 = vld [vmem:[%s1540 + $0x8] sm:$0xf]
        %v1544 = vld [vmem:[%s1540 + $0xc] sm:$0xf]
        %v1545 = vld [vmem:[%s1540 + $0x10] sm:$0xf]
        %v1546 = vld [vmem:[%s1540 + $0x14] sm:$0xf]
        %v1547 = vld [vmem:[%s1540 + $0x18] sm:$0xf]
        %v1548 = vld [vmem:[%s1540 + $0x1c] sm:$0xf]
        %v1557 = vunpack.c.l.b16 %v1541
        %v1558 = vunpack.c.l.b16 %v1542
        %v1559 = vunpack.c.l.b16 %v1543
        %v1560 = vunpack.c.l.b16 %v1544
        %v1561 = vunpack.c.l.b16 %v1545
        %v1562 = vunpack.c.l.b16 %v1546
        %v1563 = vunpack.c.l.b16 %v1547
        %v1564 = vunpack.c.l.b16 %v1548
        %v1565 = vpack.c.b16 %v1558, %v1557
        %v1566 = vpack.c.b16 %v1560, %v1559
        %v1567 = vpack.c.b16 %v1562, %v1561
        %v1568 = vpack.c.b16 %v1564, %v1563
        %v1574 = vsel %vm1224, %v1349, 0
        %v1577 = vsel %vm1224, %v1350, 0
        %1579 = vmatprep.subr.bf16.mxu0 0
        %1580 = vmatpush1.bf16.msra.mxu0 %v1565
        %1581 = vmatprep.subr.bf16.mxu0 0
        %1582 = vmatpush1.bf16.msra.mxu0 %v1566
        %1583 = vmatprep.subr.bf16.mxu0 0
        %1584 = vmatpush1.bf16.msra.mxu0 %v1567
        %1585 = vmatprep.subr.bf16.mxu0 0
        %1586 = vmatpush1.bf16.msra.mxu0 %v1568
        %1587 = vmatprep.subr.bf16.mxu0 0
        %1588 = vmatpush1.bf16.msra.mxu0 0
        %1589 = vmatprep.subr.bf16.mxu0 0
        %1590 = vmatpush1.bf16.msra.mxu0 0
        %1591 = vmatprep.subr.bf16.mxu0 0
        %1592 = vmatpush1.bf16.msra.mxu0 0
        %1593 = vmatprep.subr.bf16.mxu0 0
        %1594 = vmatpush1.bf16.msra.mxu0 0
        %1595 = vmatprep.subr.bf16.mxu0 0
        %1596 = vmatpush1.bf16.msra.mxu0 0
        %1597 = vmatprep.subr.bf16.mxu0 0
        %1598 = vmatpush1.bf16.msra.mxu0 0
        %1599 = vmatprep.subr.bf16.mxu0 0
        %1600 = vmatpush1.bf16.msra.mxu0 0
        %1601 = vmatprep.subr.bf16.mxu0 0
        %1602 = vmatpush1.bf16.msra.mxu0 0
        %1603 = vmatprep.subr.bf16.mxu0 0
        %1604 = vmatpush1.bf16.msra.mxu0 0
        %1605 = vmatprep.subr.bf16.mxu0 0
        %1606 = vmatpush1.bf16.msra.mxu0 0
        %1607 = vmatprep.subr.bf16.mxu0 0
        %1608 = vmatpush1.bf16.msra.mxu0 0
        %1609 = vmatprep.subr.bf16.mxu0 0
        %1610 = vmatpush1.bf16.msra.mxu0 0
        %1611 = vmatprep.mubr.bf16.mxu0 0
        %1612 = vmatmul.mubr.bf16.gmra.mrb[0].mxu0 %v1574
        %v1613 = vpop.f32.mrb[0].mxu0
        %v1614 = vadd.f32 0.0, %v1613
        %v1615 = vpop.f32.mrb[0].mxu0
        %v1616 = vpop.f32.mrb[0].mxu0
        %v1617 = vadd.f32 0.0, %v1616
        %v1618 = vpop.f32.mrb[0].mxu0
        %1619 = vmatprep.mubr.bf16.mxu0 0
        %1620 = vmatmul.mubr.bf16.gmra.mrb[0].mxu0 %v1577
        %v1621 = vpop.f32.mrb[0].mxu0
        %v1622 = vadd.f32 0.0, %v1621
        %v1623 = vpop.f32.mrb[0].mxu0
        %v1624 = vpop.f32.mrb[0].mxu0
        %v1625 = vadd.f32 0.0, %v1624
        %v1626 = vpop.f32.mrb[0].mxu0
        %1627 = vdwg.mxu0
        %v1628 = vadd.f32 %v1526, %v1614
        %v1629 = vadd.f32 %v1529, %v1617
        %v1630 = vadd.f32 %v1534, %v1622
        %v1631 = vadd.f32 %v1537, %v1625
        %s1632 = scalar_lea.vmem %s3, 96
        %v1633 = vld [vmem:[%s1632] sm:$0xf]
        %v1634 = vld [vmem:[%s1632 + $0x4] sm:$0xf]
        %v1635 = vld [vmem:[%s1632 + $0x8] sm:$0xf]
        %v1636 = vld [vmem:[%s1632 + $0xc] sm:$0xf]
        %v1637 = vld [vmem:[%s1632 + $0x10] sm:$0xf]
        %v1638 = vld [vmem:[%s1632 + $0x14] sm:$0xf]
        %v1639 = vld [vmem:[%s1632 + $0x18] sm:$0xf]
        %v1640 = vld [vmem:[%s1632 + $0x1c] sm:$0xf]
        %v1649 = vunpack.c.l.b16 %v1633
        %v1650 = vunpack.c.l.b16 %v1634
        %v1651 = vunpack.c.l.b16 %v1635
        %v1652 = vunpack.c.l.b16 %v1636
        %v1653 = vunpack.c.l.b16 %v1637
        %v1654 = vunpack.c.l.b16 %v1638
        %v1655 = vunpack.c.l.b16 %v1639
        %v1656 = vunpack.c.l.b16 %v1640
        %v1657 = vpack.c.b16 %v1650, %v1649
        %v1658 = vpack.c.b16 %v1652, %v1651
        %v1659 = vpack.c.b16 %v1654, %v1653
        %v1660 = vpack.c.b16 %v1656, %v1655
        %v1666 = vsel %vm1224, %v1351, 0
        %v1669 = vsel %vm1224, %v1352, 0
        %1671 = vmatprep.subr.bf16.mxu0 0
        %1672 = vmatpush1.bf16.msra.mxu0 %v1657
        %1673 = vmatprep.subr.bf16.mxu0 0
        %1674 = vmatpush1.bf16.msra.mxu0 %v1658
        %1675 = vmatprep.subr.bf16.mxu0 0
        %1676 = vmatpush1.bf16.msra.mxu0 %v1659
        %1677 = vmatprep.subr.bf16.mxu0 0
        %1678 = vmatpush1.bf16.msra.mxu0 %v1660
        %1679 = vmatprep.subr.bf16.mxu0 0
        %1680 = vmatpush1.bf16.msra.mxu0 0
        %1681 = vmatprep.subr.bf16.mxu0 0
        %1682 = vmatpush1.bf16.msra.mxu0 0
        %1683 = vmatprep.subr.bf16.mxu0 0
        %1684 = vmatpush1.bf16.msra.mxu0 0
        %1685 = vmatprep.subr.bf16.mxu0 0
        %1686 = vmatpush1.bf16.msra.mxu0 0
        %1687 = vmatprep.subr.bf16.mxu0 0
        %1688 = vmatpush1.bf16.msra.mxu0 0
        %1689 = vmatprep.subr.bf16.mxu0 0
        %1690 = vmatpush1.bf16.msra.mxu0 0
        %1691 = vmatprep.subr.bf16.mxu0 0
        %1692 = vmatpush1.bf16.msra.mxu0 0
        %1693 = vmatprep.subr.bf16.mxu0 0
        %1694 = vmatpush1.bf16.msra.mxu0 0
        %1695 = vmatprep.subr.bf16.mxu0 0
        %1696 = vmatpush1.bf16.msra.mxu0 0
        %1697 = vmatprep.subr.bf16.mxu0 0
        %1698 = vmatpush1.bf16.msra.mxu0 0
        %1699 = vmatprep.subr.bf16.mxu0 0
        %1700 = vmatpush1.bf16.msra.mxu0 0
        %1701 = vmatprep.subr.bf16.mxu0 0
        %1702 = vmatpush1.bf16.msra.mxu0 0
        %1703 = vmatprep.mubr.bf16.mxu0 0
        %1704 = vmatmul.mubr.bf16.gmra.mrb[0].mxu0 %v1666
        %v1705 = vpop.f32.mrb[0].mxu0
        %v1706 = vadd.f32 0.0, %v1705
        %v1707 = vpop.f32.mrb[0].mxu0
        %v1708 = vpop.f32.mrb[0].mxu0
        %v1709 = vadd.f32 0.0, %v1708
        %v1710 = vpop.f32.mrb[0].mxu0
        %1711 = vmatprep.mubr.bf16.mxu0 0
        %1712 = vmatmul.mubr.bf16.gmra.mrb[0].mxu0 %v1669
        %v1713 = vpop.f32.mrb[0].mxu0
        %v1714 = vadd.f32 0.0, %v1713
        %v1715 = vpop.f32.mrb[0].mxu0
        %v1716 = vpop.f32.mrb[0].mxu0
        %v1717 = vadd.f32 0.0, %v1716
        %v1718 = vpop.f32.mrb[0].mxu0
        %1719 = vdwg.mxu0
        %v1720 = vadd.f32 %v1628, %v1706
        %v1721 = vadd.f32 %v1629, %v1709
        %v1722 = vadd.f32 %v1630, %v1714
        %v1723 = vadd.f32 %v1631, %v1717
        %s1724 = scalar_lea.vmem %s3, 128
        %v1725 = vld [vmem:[%s1724] sm:$0xf]
        %v1726 = vld [vmem:[%s1724 + $0x4] sm:$0xf]
        %v1727 = vld [vmem:[%s1724 + $0x8] sm:$0xf]
        %v1728 = vld [vmem:[%s1724 + $0xc] sm:$0xf]
        %v1729 = vld [vmem:[%s1724 + $0x10] sm:$0xf]
        %v1730 = vld [vmem:[%s1724 + $0x14] sm:$0xf]
        %v1731 = vld [vmem:[%s1724 + $0x18] sm:$0xf]
        %v1732 = vld [vmem:[%s1724 + $0x1c] sm:$0xf]
        %v1741 = vunpack.c.l.b16 %v1725
        %v1742 = vunpack.c.l.b16 %v1726
        %v1743 = vunpack.c.l.b16 %v1727
        %v1744 = vunpack.c.l.b16 %v1728
        %v1745 = vunpack.c.l.b16 %v1729
        %v1746 = vunpack.c.l.b16 %v1730
        %v1747 = vunpack.c.l.b16 %v1731
        %v1748 = vunpack.c.l.b16 %v1732
        %v1749 = vpack.c.b16 %v1742, %v1741
        %v1750 = vpack.c.b16 %v1744, %v1743
        %v1751 = vpack.c.b16 %v1746, %v1745
        %v1752 = vpack.c.b16 %v1748, %v1747
        %v1758 = vsel %vm1224, %v1353, 0
        %v1761 = vsel %vm1224, %v1354, 0
        %1763 = vmatprep.subr.bf16.mxu0 0
        %1764 = vmatpush1.bf16.msra.mxu0 %v1749
        %1765 = vmatprep.subr.bf16.mxu0 0
        %1766 = vmatpush1.bf16.msra.mxu0 %v1750
        %1767 = vmatprep.subr.bf16.mxu0 0
        %1768 = vmatpush1.bf16.msra.mxu0 %v1751
        %1769 = vmatprep.subr.bf16.mxu0 0
        %1770 = vmatpush1.bf16.msra.mxu0 %v1752
        %1771 = vmatprep.subr.bf16.mxu0 0
        %1772 = vmatpush1.bf16.msra.mxu0 0
        %1773 = vmatprep.subr.bf16.mxu0 0
        %1774 = vmatpush1.bf16.msra.mxu0 0
        %1775 = vmatprep.subr.bf16.mxu0 0
        %1776 = vmatpush1.bf16.msra.mxu0 0
        %1777 = vmatprep.subr.bf16.mxu0 0
        %1778 = vmatpush1.bf16.msra.mxu0 0
        %1779 = vmatprep.subr.bf16.mxu0 0
        %1780 = vmatpush1.bf16.msra.mxu0 0
        %1781 = vmatprep.subr.bf16.mxu0 0
        %1782 = vmatpush1.bf16.msra.mxu0 0
        %1783 = vmatprep.subr.bf16.mxu0 0
        %1784 = vmatpush1.bf16.msra.mxu0 0
        %1785 = vmatprep.subr.bf16.mxu0 0
        %1786 = vmatpush1.bf16.msra.mxu0 0
        %1787 = vmatprep.subr.bf16.mxu0 0
        %1788 = vmatpush1.bf16.msra.mxu0 0
        %1789 = vmatprep.subr.bf16.mxu0 0
        %1790 = vmatpush1.bf16.msra.mxu0 0
        %1791 = vmatprep.subr.bf16.mxu0 0
        %1792 = vmatpush1.bf16.msra.mxu0 0
        %1793 = vmatprep.subr.bf16.mxu0 0
        %1794 = vmatpush1.bf16.msra.mxu0 0
        %1795 = vmatprep.mubr.bf16.mxu0 0
        %1796 = vmatmul.mubr.bf16.gmra.mrb[0].mxu0 %v1758
        %v1797 = vpop.f32.mrb[0].mxu0
        %v1798 = vadd.f32 0.0, %v1797
        %v1799 = vpop.f32.mrb[0].mxu0
        %v1800 = vpop.f32.mrb[0].mxu0
        %v1801 = vadd.f32 0.0, %v1800
        %v1802 = vpop.f32.mrb[0].mxu0
        %1803 = vmatprep.mubr.bf16.mxu0 0
        %1804 = vmatmul.mubr.bf16.gmra.mrb[0].mxu0 %v1761
        %v1805 = vpop.f32.mrb[0].mxu0
        %v1806 = vadd.f32 0.0, %v1805
        %v1807 = vpop.f32.mrb[0].mxu0
        %v1808 = vpop.f32.mrb[0].mxu0
        %v1809 = vadd.f32 0.0, %v1808
        %v1810 = vpop.f32.mrb[0].mxu0
        %1811 = vdwg.mxu0
        %v1812 = vadd.f32 %v1720, %v1798
        %v1813 = vadd.f32 %v1721, %v1801
        %v1814 = vadd.f32 %v1722, %v1806
        %v1815 = vadd.f32 %v1723, %v1809
        %s1816 = scalar_lea.vmem %s3, 160
        %v1817 = vld [vmem:[%s1816] sm:$0xf]
        %v1818 = vld [vmem:[%s1816 + $0x4] sm:$0xf]
        %v1819 = vld [vmem:[%s1816 + $0x8] sm:$0xf]
        %v1820 = vld [vmem:[%s1816 + $0xc] sm:$0xf]
        %v1821 = vld [vmem:[%s1816 + $0x10] sm:$0xf]
        %v1822 = vld [vmem:[%s1816 + $0x14] sm:$0xf]
        %v1823 = vld [vmem:[%s1816 + $0x18] sm:$0xf]
        %v1824 = vld [vmem:[%s1816 + $0x1c] sm:$0xf]
        %v1833 = vunpack.c.l.b16 %v1817
        %v1834 = vunpack.c.l.b16 %v1818
        %v1835 = vunpack.c.l.b16 %v1819
        %v1836 = vunpack.c.l.b16 %v1820
        %v1837 = vunpack.c.l.b16 %v1821
        %v1838 = vunpack.c.l.b16 %v1822
        %v1839 = vunpack.c.l.b16 %v1823
        %v1840 = vunpack.c.l.b16 %v1824
        %v1841 = vpack.c.b16 %v1834, %v1833
        %v1842 = vpack.c.b16 %v1836, %v1835
        %v1843 = vpack.c.b16 %v1838, %v1837
        %v1844 = vpack.c.b16 %v1840, %v1839
        %v1850 = vsel %vm1224, %v1355, 0
        %v1853 = vsel %vm1224, %v1356, 0
        %1855 = vmatprep.subr.bf16.mxu0 0
        %1856 = vmatpush1.bf16.msra.mxu0 %v1841
        %1857 = vmatprep.subr.bf16.mxu0 0
        %1858 = vmatpush1.bf16.msra.mxu0 %v1842
        %1859 = vmatprep.subr.bf16.mxu0 0
        %1860 = vmatpush1.bf16.msra.mxu0 %v1843
        %1861 = vmatprep.subr.bf16.mxu0 0
        %1862 = vmatpush1.bf16.msra.mxu0 %v1844
        %1863 = vmatprep.subr.bf16.mxu0 0
        %1864 = vmatpush1.bf16.msra.mxu0 0
        %1865 = vmatprep.subr.bf16.mxu0 0
        %1866 = vmatpush1.bf16.msra.mxu0 0
        %1867 = vmatprep.subr.bf16.mxu0 0
        %1868 = vmatpush1.bf16.msra.mxu0 0
        %1869 = vmatprep.subr.bf16.mxu0 0
        %1870 = vmatpush1.bf16.msra.mxu0 0
        %1871 = vmatprep.subr.bf16.mxu0 0
        %1872 = vmatpush1.bf16.msra.mxu0 0
        %1873 = vmatprep.subr.bf16.mxu0 0
        %1874 = vmatpush1.bf16.msra.mxu0 0
        %1875 = vmatprep.subr.bf16.mxu0 0
        %1876 = vmatpush1.bf16.msra.mxu0 0
        %1877 = vmatprep.subr.bf16.mxu0 0
        %1878 = vmatpush1.bf16.msra.mxu0 0
        %1879 = vmatprep.subr.bf16.mxu0 0
        %1880 = vmatpush1.bf16.msra.mxu0 0
        %1881 = vmatprep.subr.bf16.mxu0 0
        %1882 = vmatpush1.bf16.msra.mxu0 0
        %1883 = vmatprep.subr.bf16.mxu0 0
        %1884 = vmatpush1.bf16.msra.mxu0 0
        %1885 = vmatprep.subr.bf16.mxu0 0
        %1886 = vmatpush1.bf16.msra.mxu0 0
        %1887 = vmatprep.mubr.bf16.mxu0 0
        %1888 = vmatmul.mubr.bf16.gmra.mrb[0].mxu0 %v1850
        %v1889 = vpop.f32.mrb[0].mxu0
        %v1890 = vadd.f32 0.0, %v1889
        %v1891 = vpop.f32.mrb[0].mxu0
        %v1892 = vpop.f32.mrb[0].mxu0
        %v1893 = vadd.f32 0.0, %v1892
        %v1894 = vpop.f32.mrb[0].mxu0
        %1895 = vmatprep.mubr.bf16.mxu0 0
        %1896 = vmatmul.mubr.bf16.gmra.mrb[0].mxu0 %v1853
        %v1897 = vpop.f32.mrb[0].mxu0
        %v1898 = vadd.f32 0.0, %v1897
        %v1899 = vpop.f32.mrb[0].mxu0
        %v1900 = vpop.f32.mrb[0].mxu0
        %v1901 = vadd.f32 0.0, %v1900
        %v1902 = vpop.f32.mrb[0].mxu0
        %1903 = vdwg.mxu0
        %v1904 = vadd.f32 %v1812, %v1890
        %v1905 = vadd.f32 %v1813, %v1893
        %v1906 = vadd.f32 %v1814, %v1898
        %v1907 = vadd.f32 %v1815, %v1901
        %s1908 = scalar_lea.vmem %s3, 192
        %v1909 = vld [vmem:[%s1908] sm:$0xf]
        %v1910 = vld [vmem:[%s1908 + $0x4] sm:$0xf]
        %v1911 = vld [vmem:[%s1908 + $0x8] sm:$0xf]
        %v1912 = vld [vmem:[%s1908 + $0xc] sm:$0xf]
        %v1913 = vld [vmem:[%s1908 + $0x10] sm:$0xf]
        %v1914 = vld [vmem:[%s1908 + $0x14] sm:$0xf]
        %v1915 = vld [vmem:[%s1908 + $0x18] sm:$0xf]
        %v1916 = vld [vmem:[%s1908 + $0x1c] sm:$0xf]
        %v1925 = vunpack.c.l.b16 %v1909
        %v1926 = vunpack.c.l.b16 %v1910
        %v1927 = vunpack.c.l.b16 %v1911
        %v1928 = vunpack.c.l.b16 %v1912
        %v1929 = vunpack.c.l.b16 %v1913
        %v1930 = vunpack.c.l.b16 %v1914
        %v1931 = vunpack.c.l.b16 %v1915
        %v1932 = vunpack.c.l.b16 %v1916
        %v1933 = vpack.c.b16 %v1926, %v1925
        %v1934 = vpack.c.b16 %v1928, %v1927
        %v1935 = vpack.c.b16 %v1930, %v1929
        %v1936 = vpack.c.b16 %v1932, %v1931
        %v1942 = vsel %vm1224, %v1357, 0
        %v1945 = vsel %vm1224, %v1358, 0
        %1947 = vmatprep.subr.bf16.mxu0 0
        %1948 = vmatpush1.bf16.msra.mxu0 %v1933
        %1949 = vmatprep.subr.bf16.mxu0 0
        %1950 = vmatpush1.bf16.msra.mxu0 %v1934
        %1951 = vmatprep.subr.bf16.mxu0 0
        %1952 = vmatpush1.bf16.msra.mxu0 %v1935
        %1953 = vmatprep.subr.bf16.mxu0 0
        %1954 = vmatpush1.bf16.msra.mxu0 %v1936
        %1955 = vmatprep.subr.bf16.mxu0 0
        %1956 = vmatpush1.bf16.msra.mxu0 0
        %1957 = vmatprep.subr.bf16.mxu0 0
        %1958 = vmatpush1.bf16.msra.mxu0 0
        %1959 = vmatprep.subr.bf16.mxu0 0
        %1960 = vmatpush1.bf16.msra.mxu0 0
        %1961 = vmatprep.subr.bf16.mxu0 0
        %1962 = vmatpush1.bf16.msra.mxu0 0
        %1963 = vmatprep.subr.bf16.mxu0 0
        %1964 = vmatpush1.bf16.msra.mxu0 0
        %1965 = vmatprep.subr.bf16.mxu0 0
        %1966 = vmatpush1.bf16.msra.mxu0 0
        %1967 = vmatprep.subr.bf16.mxu0 0
        %1968 = vmatpush1.bf16.msra.mxu0 0
        %1969 = vmatprep.subr.bf16.mxu0 0
        %1970 = vmatpush1.bf16.msra.mxu0 0
        %1971 = vmatprep.subr.bf16.mxu0 0
        %1972 = vmatpush1.bf16.msra.mxu0 0
        %1973 = vmatprep.subr.bf16.mxu0 0
        %1974 = vmatpush1.bf16.msra.mxu0 0
        %1975 = vmatprep.subr.bf16.mxu0 0
        %1976 = vmatpush1.bf16.msra.mxu0 0
        %1977 = vmatprep.subr.bf16.mxu0 0
        %1978 = vmatpush1.bf16.msra.mxu0 0
        %1979 = vmatprep.mubr.bf16.mxu0 0
        %1980 = vmatmul.mubr.bf16.gmra.mrb[0].mxu0 %v1942
        %v1981 = vpop.f32.mrb[0].mxu0
        %v1982 = vadd.f32 0.0, %v1981
        %v1983 = vpop.f32.mrb[0].mxu0
        %v1984 = vpop.f32.mrb[0].mxu0
        %v1985 = vadd.f32 0.0, %v1984
        %v1986 = vpop.f32.mrb[0].mxu0
        %1987 = vmatprep.mubr.bf16.mxu0 0
        %1988 = vmatmul.mubr.bf16.gmra.mrb[0].mxu0 %v1945
        %v1989 = vpop.f32.mrb[0].mxu0
        %v1990 = vadd.f32 0.0, %v1989
        %v1991 = vpop.f32.mrb[0].mxu0
        %v1992 = vpop.f32.mrb[0].mxu0
        %v1993 = vadd.f32 0.0, %v1992
        %v1994 = vpop.f32.mrb[0].mxu0
        %1995 = vdwg.mxu0
        %v1996 = vadd.f32 %v1904, %v1982
        %v1997 = vadd.f32 %v1905, %v1985
        %v1998 = vadd.f32 %v1906, %v1990
        %v1999 = vadd.f32 %v1907, %v1993
        %s2000 = scalar_lea.vmem %s3, 224
        %v2001 = vld [vmem:[%s2000] sm:$0xf]
        %v2002 = vld [vmem:[%s2000 + $0x4] sm:$0xf]
        %v2003 = vld [vmem:[%s2000 + $0x8] sm:$0xf]
        %v2004 = vld [vmem:[%s2000 + $0xc] sm:$0xf]
        %v2005 = vld [vmem:[%s2000 + $0x10] sm:$0xf]
        %v2006 = vld [vmem:[%s2000 + $0x14] sm:$0xf]
        %v2007 = vld [vmem:[%s2000 + $0x18] sm:$0xf]
        %v2008 = vld [vmem:[%s2000 + $0x1c] sm:$0xf]
        %v2017 = vunpack.c.l.b16 %v2001
        %v2018 = vunpack.c.l.b16 %v2002
        %v2019 = vunpack.c.l.b16 %v2003
        %v2020 = vunpack.c.l.b16 %v2004
        %v2021 = vunpack.c.l.b16 %v2005
        %v2022 = vunpack.c.l.b16 %v2006
        %v2023 = vunpack.c.l.b16 %v2007
        %v2024 = vunpack.c.l.b16 %v2008
        %v2025 = vpack.c.b16 %v2018, %v2017
        %v2026 = vpack.c.b16 %v2020, %v2019
        %v2027 = vpack.c.b16 %v2022, %v2021
        %v2028 = vpack.c.b16 %v2024, %v2023
        %v2034 = vsel %vm1224, %v1359, 0
        %v2037 = vsel %vm1224, %v1360, 0
        %2039 = vmatprep.subr.bf16.mxu0 0
        %2040 = vmatpush1.bf16.msra.mxu0 %v2025
        %2041 = vmatprep.subr.bf16.mxu0 0
        %2042 = vmatpush1.bf16.msra.mxu0 %v2026
        %2043 = vmatprep.subr.bf16.mxu0 0
        %2044 = vmatpush1.bf16.msra.mxu0 %v2027
        %2045 = vmatprep.subr.bf16.mxu0 0
        %2046 = vmatpush1.bf16.msra.mxu0 %v2028
        %2047 = vmatprep.subr.bf16.mxu0 0
        %2048 = vmatpush1.bf16.msra.mxu0 0
        %2049 = vmatprep.subr.bf16.mxu0 0
        %2050 = vmatpush1.bf16.msra.mxu0 0
        %2051 = vmatprep.subr.bf16.mxu0 0
        %2052 = vmatpush1.bf16.msra.mxu0 0
        %2053 = vmatprep.subr.bf16.mxu0 0
        %2054 = vmatpush1.bf16.msra.mxu0 0
        %2055 = vmatprep.subr.bf16.mxu0 0
        %2056 = vmatpush1.bf16.msra.mxu0 0
        %2057 = vmatprep.subr.bf16.mxu0 0
        %2058 = vmatpush1.bf16.msra.mxu0 0
        %2059 = vmatprep.subr.bf16.mxu0 0
        %2060 = vmatpush1.bf16.msra.mxu0 0
        %2061 = vmatprep.subr.bf16.mxu0 0
        %2062 = vmatpush1.bf16.msra.mxu0 0
        %2063 = vmatprep.subr.bf16.mxu0 0
        %2064 = vmatpush1.bf16.msra.mxu0 0
        %2065 = vmatprep.subr.bf16.mxu0 0
        %2066 = vmatpush1.bf16.msra.mxu0 0
        %2067 = vmatprep.subr.bf16.mxu0 0
        %2068 = vmatpush1.bf16.msra.mxu0 0
        %2069 = vmatprep.subr.bf16.mxu0 0
        %2070 = vmatpush1.bf16.msra.mxu0 0
        %2071 = vmatprep.mubr.bf16.mxu0 0
        %2072 = vmatmul.mubr.bf16.gmra.mrb[0].mxu0 %v2034
        %v2073 = vpop.f32.mrb[0].mxu0
        %v2074 = vadd.f32 0.0, %v2073
        %v2075 = vpop.f32.mrb[0].mxu0
        %v2076 = vpop.f32.mrb[0].mxu0
        %v2077 = vadd.f32 0.0, %v2076
        %v2078 = vpop.f32.mrb[0].mxu0
        %2079 = vmatprep.mubr.bf16.mxu0 0
        %2080 = vmatmul.mubr.bf16.gmra.mrb[0].mxu0 %v2037
        %v2081 = vpop.f32.mrb[0].mxu0
        %v2082 = vadd.f32 0.0, %v2081
        %v2083 = vpop.f32.mrb[0].mxu0
        %v2084 = vpop.f32.mrb[0].mxu0
        %v2085 = vadd.f32 0.0, %v2084
        %v2086 = vpop.f32.mrb[0].mxu0
        %2087 = vdwg.mxu0
        %v2088 = vadd.f32 %v1996, %v2074
        %v2089 = vadd.f32 %v1997, %v2077
        %v2090 = vadd.f32 %v1998, %v2082
        %v2091 = vadd.f32 %v1999, %v2085
        %s2092 = scalar_lea.vmem %s3, 256
        %v2093 = vld [vmem:[%s2092] sm:$0xf]
        %v2094 = vld [vmem:[%s2092 + $0x4] sm:$0xf]
        %v2095 = vld [vmem:[%s2092 + $0x8] sm:$0xf]
        %v2096 = vld [vmem:[%s2092 + $0xc] sm:$0xf]
        %v2097 = vld [vmem:[%s2092 + $0x10] sm:$0xf]
        %v2098 = vld [vmem:[%s2092 + $0x14] sm:$0xf]
        %v2099 = vld [vmem:[%s2092 + $0x18] sm:$0xf]
        %v2100 = vld [vmem:[%s2092 + $0x1c] sm:$0xf]
        %v2109 = vunpack.c.l.b16 %v2093
        %v2110 = vunpack.c.l.b16 %v2094
        %v2111 = vunpack.c.l.b16 %v2095
        %v2112 = vunpack.c.l.b16 %v2096
        %v2113 = vunpack.c.l.b16 %v2097
        %v2114 = vunpack.c.l.b16 %v2098
        %v2115 = vunpack.c.l.b16 %v2099
        %v2116 = vunpack.c.l.b16 %v2100
        %v2117 = vpack.c.b16 %v2110, %v2109
        %v2118 = vpack.c.b16 %v2112, %v2111
        %v2119 = vpack.c.b16 %v2114, %v2113
        %v2120 = vpack.c.b16 %v2116, %v2115
        %v2126 = vsel %vm1224, %v1361, 0
        %v2129 = vsel %vm1224, %v1362, 0
        %2131 = vmatprep.subr.bf16.mxu0 0
        %2132 = vmatpush1.bf16.msra.mxu0 %v2117
        %2133 = vmatprep.subr.bf16.mxu0 0
        %2134 = vmatpush1.bf16.msra.mxu0 %v2118
        %2135 = vmatprep.subr.bf16.mxu0 0
        %2136 = vmatpush1.bf16.msra.mxu0 %v2119
        %2137 = vmatprep.subr.bf16.mxu0 0
        %2138 = vmatpush1.bf16.msra.mxu0 %v2120
        %2139 = vmatprep.subr.bf16.mxu0 0
        %2140 = vmatpush1.bf16.msra.mxu0 0
        %2141 = vmatprep.subr.bf16.mxu0 0
        %2142 = vmatpush1.bf16.msra.mxu0 0
        %2143 = vmatprep.subr.bf16.mxu0 0
        %2144 = vmatpush1.bf16.msra.mxu0 0
        %2145 = vmatprep.subr.bf16.mxu0 0
        %2146 = vmatpush1.bf16.msra.mxu0 0
        %2147 = vmatprep.subr.bf16.mxu0 0
        %2148 = vmatpush1.bf16.msra.mxu0 0
        %2149 = vmatprep.subr.bf16.mxu0 0
        %2150 = vmatpush1.bf16.msra.mxu0 0
        %2151 = vmatprep.subr.bf16.mxu0 0
        %2152 = vmatpush1.bf16.msra.mxu0 0
        %2153 = vmatprep.subr.bf16.mxu0 0
        %2154 = vmatpush1.bf16.msra.mxu0 0
        %2155 = vmatprep.subr.bf16.mxu0 0
        %2156 = vmatpush1.bf16.msra.mxu0 0
        %2157 = vmatprep.subr.bf16.mxu0 0
        %2158 = vmatpush1.bf16.msra.mxu0 0
        %2159 = vmatprep.subr.bf16.mxu0 0
        %2160 = vmatpush1.bf16.msra.mxu0 0
        %2161 = vmatprep.subr.bf16.mxu0 0
        %2162 = vmatpush1.bf16.msra.mxu0 0
        %2163 = vmatprep.mubr.bf16.mxu0 0
        %2164 = vmatmul.mubr.bf16.gmra.mrb[0].mxu0 %v2126
        %v2165 = vpop.f32.mrb[0].mxu0
        %v2166 = vadd.f32 0.0, %v2165
        %v2167 = vpop.f32.mrb[0].mxu0
        %v2168 = vpop.f32.mrb[0].mxu0
        %v2169 = vadd.f32 0.0, %v2168
        %v2170 = vpop.f32.mrb[0].mxu0
        %2171 = vmatprep.mubr.bf16.mxu0 0
        %2172 = vmatmul.mubr.bf16.gmra.mrb[0].mxu0 %v2129
        %v2173 = vpop.f32.mrb[0].mxu0
        %v2174 = vadd.f32 0.0, %v2173
        %v2175 = vpop.f32.mrb[0].mxu0
        %v2176 = vpop.f32.mrb[0].mxu0
        %v2177 = vadd.f32 0.0, %v2176
        %v2178 = vpop.f32.mrb[0].mxu0
        %2179 = vdwg.mxu0
        %v2180 = vadd.f32 %v2088, %v2166
        %v2181 = vadd.f32 %v2089, %v2169
        %v2182 = vadd.f32 %v2090, %v2174
        %v2183 = vadd.f32 %v2091, %v2177
        %s2184 = scalar_lea.vmem %s3, 288
        %v2185 = vld [vmem:[%s2184] sm:$0xf]
        %v2186 = vld [vmem:[%s2184 + $0x4] sm:$0xf]
        %v2187 = vld [vmem:[%s2184 + $0x8] sm:$0xf]
        %v2188 = vld [vmem:[%s2184 + $0xc] sm:$0xf]
        %v2189 = vld [vmem:[%s2184 + $0x10] sm:$0xf]
        %v2190 = vld [vmem:[%s2184 + $0x14] sm:$0xf]
        %v2191 = vld [vmem:[%s2184 + $0x18] sm:$0xf]
        %v2192 = vld [vmem:[%s2184 + $0x1c] sm:$0xf]
        %v2201 = vunpack.c.l.b16 %v2185
        %v2202 = vunpack.c.l.b16 %v2186
        %v2203 = vunpack.c.l.b16 %v2187
        %v2204 = vunpack.c.l.b16 %v2188
        %v2205 = vunpack.c.l.b16 %v2189
        %v2206 = vunpack.c.l.b16 %v2190
        %v2207 = vunpack.c.l.b16 %v2191
        %v2208 = vunpack.c.l.b16 %v2192
        %v2209 = vpack.c.b16 %v2202, %v2201
        %v2210 = vpack.c.b16 %v2204, %v2203
        %v2211 = vpack.c.b16 %v2206, %v2205
        %v2212 = vpack.c.b16 %v2208, %v2207
        %v2218 = vsel %vm1224, %v1363, 0
        %v2221 = vsel %vm1224, %v1364, 0
        %2223 = vmatprep.subr.bf16.mxu0 0
        %2224 = vmatpush1.bf16.msra.mxu0 %v2209
        %2225 = vmatprep.subr.bf16.mxu0 0
        %2226 = vmatpush1.bf16.msra.mxu0 %v2210
        %2227 = vmatprep.subr.bf16.mxu0 0
        %2228 = vmatpush1.bf16.msra.mxu0 %v2211
        %2229 = vmatprep.subr.bf16.mxu0 0
        %2230 = vmatpush1.bf16.msra.mxu0 %v2212
        %2231 = vmatprep.subr.bf16.mxu0 0
        %2232 = vmatpush1.bf16.msra.mxu0 0
        %2233 = vmatprep.subr.bf16.mxu0 0
        %2234 = vmatpush1.bf16.msra.mxu0 0
        %2235 = vmatprep.subr.bf16.mxu0 0
        %2236 = vmatpush1.bf16.msra.mxu0 0
        %2237 = vmatprep.subr.bf16.mxu0 0
        %2238 = vmatpush1.bf16.msra.mxu0 0
        %2239 = vmatprep.subr.bf16.mxu0 0
        %2240 = vmatpush1.bf16.msra.mxu0 0
        %2241 = vmatprep.subr.bf16.mxu0 0
        %2242 = vmatpush1.bf16.msra.mxu0 0
        %2243 = vmatprep.subr.bf16.mxu0 0
        %2244 = vmatpush1.bf16.msra.mxu0 0
        %2245 = vmatprep.subr.bf16.mxu0 0
        %2246 = vmatpush1.bf16.msra.mxu0 0
        %2247 = vmatprep.subr.bf16.mxu0 0
        %2248 = vmatpush1.bf16.msra.mxu0 0
        %2249 = vmatprep.subr.bf16.mxu0 0
        %2250 = vmatpush1.bf16.msra.mxu0 0
        %2251 = vmatprep.subr.bf16.mxu0 0
        %2252 = vmatpush1.bf16.msra.mxu0 0
        %2253 = vmatprep.subr.bf16.mxu0 0
        %2254 = vmatpush1.bf16.msra.mxu0 0
        %2255 = vmatprep.mubr.bf16.mxu0 0
        %2256 = vmatmul.mubr.bf16.gmra.mrb[0].mxu0 %v2218
        %v2257 = vpop.f32.mrb[0].mxu0
        %v2258 = vadd.f32 0.0, %v2257
        %v2259 = vpop.f32.mrb[0].mxu0
        %v2260 = vpop.f32.mrb[0].mxu0
        %v2261 = vadd.f32 0.0, %v2260
        %v2262 = vpop.f32.mrb[0].mxu0
        %2263 = vmatprep.mubr.bf16.mxu0 0
        %2264 = vmatmul.mubr.bf16.gmra.mrb[0].mxu0 %v2221
        %v2265 = vpop.f32.mrb[0].mxu0
        %v2266 = vadd.f32 0.0, %v2265
        %v2267 = vpop.f32.mrb[0].mxu0
        %v2268 = vpop.f32.mrb[0].mxu0
        %v2269 = vadd.f32 0.0, %v2268
        %v2270 = vpop.f32.mrb[0].mxu0
        %2271 = vdwg.mxu0
        %v2272 = vadd.f32 %v2180, %v2258
        %v2273 = vadd.f32 %v2181, %v2261
        %v2274 = vadd.f32 %v2182, %v2266
        %v2275 = vadd.f32 %v2183, %v2269
        %v2276 = vld [vmem:[%s4] sm:$0x1]
        %v2278 = vlaneseq
        %v2279 = vshrl.u32 %v2278, 7
        %v2280 = vsub.s32 0, %v2279
        %v2281 = vrot.slane %v2276, %v2280
        %v2283 = vadd.f32 %v2272, %v2281
        %v2284 = vadd.f32 %v2273, %v2281
        %v2285 = vadd.f32 %v2274, %v2281
        %v2286 = vadd.f32 %v2275, %v2281
        %v2287 = vmax.f32 %v2283, 0.0
        %v2288 = vmax.f32 %v2284, 0.0
        %v2289 = vmax.f32 %v2285, 0.0
        %v2290 = vmax.f32 %v2286, 0.0
        %v2291 = vld [vmem:[%s5] sm:$0xff]
        %v2292 = vld [vmem:[%s5 + $0x8] sm:$0xff]
        %v2293 = vld [vmem:[%s6] sm:$0x1]
        %v2295 = vlaneseq
        %v2296 = vshrl.u32 %v2295, 7
        %v2297 = vsub.s32 0, %v2296
        %v2298 = vrot.slane %v2293, %v2297
        %vm2300 = vcmask 130048
        %v2302 = vsel %vm2300, %v2287, 0
        %v2305 = vsel %vm2300, %v2288, 0
        %v2308 = vsel %vm2300, %v2289, 0
        %v2311 = vsel %vm2300, %v2290, 0
        %2313 = vmatprep.subr.mxu0 0.0
        %2314 = vmatpush1.msra.mxu0 %v2291
        %2315 = vmatprep.subr.mxu0 0.0
        %2316 = vmatpush1.msra.mxu0 %v2292
        %2317 = vmatprep.subr.mxu0 0.0
        %2318 = vmatpush1.msra.mxu0 0.0
        %2319 = vmatprep.subr.mxu0 0.0
        %2320 = vmatpush1.msra.mxu0 0.0
        %2321 = vmatprep.subr.mxu0 0.0
        %2322 = vmatpush1.msra.mxu0 0.0
        %2323 = vmatprep.subr.mxu0 0.0
        %2324 = vmatpush1.msra.mxu0 0.0
        %2325 = vmatprep.subr.mxu0 0.0
        %2326 = vmatpush1.msra.mxu0 0.0
        %2327 = vmatprep.subr.mxu0 0.0
        %2328 = vmatpush1.msra.mxu0 0.0
        %2329 = vmatprep.subr.mxu0 0.0
        %2330 = vmatpush1.msra.mxu0 0.0
        %2331 = vmatprep.subr.mxu0 0.0
        %2332 = vmatpush1.msra.mxu0 0.0
        %2333 = vmatprep.subr.mxu0 0.0
        %2334 = vmatpush1.msra.mxu0 0.0
        %2335 = vmatprep.subr.mxu0 0.0
        %2336 = vmatpush1.msra.mxu0 0.0
        %2337 = vmatprep.subr.mxu0 0.0
        %2338 = vmatpush1.msra.mxu0 0.0
        %2339 = vmatprep.subr.mxu0 0.0
        %2340 = vmatpush1.msra.mxu0 0.0
        %2341 = vmatprep.subr.mxu0 0.0
        %2342 = vmatpush1.msra.mxu0 0.0
        %2343 = vmatprep.subr.mxu0 0.0
        %2344 = vmatpush1.msra.mxu0 0.0
        %2345 = vmatprep.subr.mxu0 0.0
        %2346 = vmatpush1.msra.mxu0 0.0
        %2347 = vmatprep.subr.mxu0 0.0
        %2348 = vmatpush1.msra.mxu0 0.0
        %2349 = vmatprep.subr.mxu0 0.0
        %2350 = vmatpush1.msra.mxu0 0.0
        %2351 = vmatprep.subr.mxu0 0.0
        %2352 = vmatpush1.msra.mxu0 0.0
        %2353 = vmatprep.subr.mxu0 0.0
        %2354 = vmatpush1.msra.mxu0 0.0
        %2355 = vmatprep.subr.mxu0 0.0
        %2356 = vmatpush1.msra.mxu0 0.0
        %2357 = vmatprep.subr.mxu0 0.0
        %2358 = vmatpush1.msra.mxu0 0.0
        %2359 = vmatprep.subr.mxu0 0.0
        %2360 = vmatpush1.msra.mxu0 0.0
        %2361 = vmatprep.subr.mxu0 0.0
        %2362 = vmatpush1.msra.mxu0 0.0
        %2363 = vmatprep.subr.mxu0 0.0
        %2364 = vmatpush1.msra.mxu0 0.0
        %2365 = vmatprep.subr.mxu0 0.0
        %2366 = vmatpush1.msra.mxu0 0.0
        %2367 = vmatprep.subr.mxu0 0.0
        %2368 = vmatpush1.msra.mxu0 0.0
        %2369 = vmatprep.subr.mxu0 0.0
        %2370 = vmatpush1.msra.mxu0 0.0
        %2371 = vmatprep.subr.mxu0 0.0
        %2372 = vmatpush1.msra.mxu0 0.0
        %2373 = vmatprep.subr.mxu0 0.0
        %2374 = vmatpush1.msra.mxu0 0.0
        %2375 = vmatprep.subr.mxu0 0.0
        %2376 = vmatpush1.msra.mxu0 0.0
        %2377 = vmatprep.mubr.f32.mxu0 0.0
        %2378 = vmatmul.mubr.f32.gmra.mrb[0].mxu0 %v2302
        %v2379 = vpop.f32.mrb[0].mxu0
        %v2380 = vadd.f32 %v2298, %v2379
        %v2381 = vpop.f32.mrb[0].mxu0
        %2382 = vmatprep.mubr.f32.mxu0 0.0
        %2383 = vmatmul.mubr.f32.gmra.mrb[0].mxu0 %v2305
        %v2384 = vpop.f32.mrb[0].mxu0
        %v2385 = vadd.f32 %v2298, %v2384
        %v2386 = vpop.f32.mrb[0].mxu0
        %2387 = vmatprep.mubr.f32.mxu0 0.0
        %2388 = vmatmul.mubr.f32.gmra.mrb[0].mxu0 %v2308
        %v2389 = vpop.f32.mrb[0].mxu0
        %v2390 = vadd.f32 %v2298, %v2389
        %v2391 = vpop.f32.mrb[0].mxu0
        %2392 = vmatprep.mubr.f32.mxu0 0.0
        %2393 = vmatmul.mubr.f32.gmra.mrb[0].mxu0 %v2311
        %v2394 = vpop.f32.mrb[0].mxu0
        %v2395 = vadd.f32 %v2298, %v2394
        %v2396 = vpop.f32.mrb[0].mxu0
        %2397 = vdwg.mxu0
        %vm2398 = vcmask 15360
        %v2399 = vsel %vm2398, %v2380, -inf
        %2400 = vmax.xlane.f32.xlu0 %v2399
        %v2401 = vpop.xlane.xlu0 %2400
        %v2402 = vsel %vm2398, %v2385, -inf
        %2403 = vmax.xlane.f32.xlu0 %v2402
        %v2404 = vpop.xlane.xlu0 %2403
        %v2405 = vsel %vm2398, %v2390, -inf
        %2406 = vmax.xlane.f32.xlu0 %v2405
        %v2407 = vpop.xlane.xlu0 %2406
        %v2408 = vsel %vm2398, %v2395, -inf
        %2409 = vmax.xlane.f32.xlu0 %v2408
        %v2410 = vpop.xlane.xlu0 %2409
        %v2411 = vsub.f32 %v2380, %v2401
        %v2412 = vsub.f32 %v2385, %v2404
        %v2413 = vsub.f32 %v2390, %v2407
        %v2414 = vsub.f32 %v2395, %v2410
        %v2415 = vmul.f32 %v2411, 1.442695
        %v2416 = vpow.pop %v2415
        %v2417 = vmul.f32 %v2412, 1.442695
        %v2418 = vpow.pop %v2417
        %v2419 = vmul.f32 %v2413, 1.442695
        %v2420 = vpow.pop %v2419
        %v2421 = vmul.f32 %v2414, 1.442695
        %v2422 = vpow.pop %v2421
        %v2423 = vsel %vm2398, %v2416, 0.0
        %2424 = vadd.xlane.f32.xlu0 %v2423
        %v2425 = vpop.xlane.xlu0 %2424
        %v2426 = vsel %vm2398, %v2418, 0.0
        %2427 = vadd.xlane.f32.xlu0 %v2426
        %v2428 = vpop.xlane.xlu0 %2427
        %v2429 = vsel %vm2398, %v2420, 0.0
        %2430 = vadd.xlane.f32.xlu0 %v2429
        %v2431 = vpop.xlane.xlu0 %2430
        %v2432 = vsel %vm2398, %v2422, 0.0
        %2433 = vadd.xlane.f32.xlu0 %v2432
        %v2434 = vpop.xlane.xlu0 %2433
        %v2435 = vrcp.pop %v2425
        %v2436 = vmul.f32 %v2416, %v2435
        %v2437 = vrcp.pop %v2428
        %v2438 = vmul.f32 %v2418, %v2437
        %v2439 = vrcp.pop %v2431
        %v2440 = vmul.f32 %v2420, %v2439
        %v2441 = vrcp.pop %v2434
        %v2442 = vmul.f32 %v2422, %v2441
        %2443 = vst.msk [vmem:[%s324] sm:$0xff] %vm2398, %v2436
        %2444 = vst.msk [vmem:[%s324 + $0x8] sm:$0xff] %vm2398, %v2438
        %2445 = vst.msk [vmem:[%s324 + $0x10] sm:$0xff] %vm2398, %v2440
        %2446 = vst.msk [vmem:[%s324 + $0x18] sm:$0xff] %vm2398, %v2442
        %s2447 = smul.u32 4, %s21
        %p2448 = scmp.lt.s32.totalorder %s2447, 7
        %s2449 = scalar_select %p2448, %s2447, 7
        %s2450 = smul.addr %s2449, 8
        %s2451 = scalar_lea.vmem %s7, %s2450
        // Predicated region
        $region53: #{tpu_custom_call.1} parent=47 // pred_check
          %p2452 = pneg %p191
        $region54: #{tpu_custom_call.1} parent=47 // pred_check_branch
          %2454 = sbr.rel (%p2452) target = $region56
        $region55: #{tpu_custom_call.1} parent=47 // pred_region
          %s2455 = smul.u32 4, %s21
        $region56: #{tpu_custom_call.1} parent=47 // pred_fallthru
          _
      $region48: #{tpu_custom_call.1} parent=5 // pred_fallthru
        _
      %p2456 = scmp.le.s32.totalorder 2, %s16
      // Predicated region
      $region57: #{tpu_custom_call.1} parent=5 // pred_check
        %p2457 = pneg %p2456
      $region58: #{tpu_custom_call.1} parent=5 // pred_check_branch
        %2459 = sbr.rel (%p2457) target = $region60
      $region59: #{tpu_custom_call.1} parent=5 // pred_region
        %s2460 = ssub.s32 %s16, 2
        // Predicated region
        $region61: #{tpu_custom_call.1} parent=59 // pred_check
          %p2461 = pneg %p197
        $region62: #{tpu_custom_call.1} parent=59 // pred_check_branch
          %2463 = sbr.rel (%p2461) target = $region64
        $region63: #{tpu_custom_call.1} parent=59 // pred_region
          %s2464 = smul.u32 4, %s22
          %p2465 = scmp.lt.s32.totalorder %s2464, 7
          %s2466 = scalar_select %p2465, %s2464, 7
          %s2467 = smul.addr %s2466, 8
          %s2468 = scalar_lea.vmem %s7, %s2467
        $region64: #{tpu_custom_call.1} parent=59 // pred_fallthru
          _
      $region60: #{tpu_custom_call.1} parent=5 // pred_fallthru
        _
    $region6: #{tpu_custom_call.1} parent=1 // loop_footer
      %s20 = sadd.s32 1, %s16
    $region7: #{tpu_custom_call.1} parent=1 // loop_footer_branch
      %15 = sbr.rel target = $region3
    $region8: #{tpu_custom_call.1} parent=1 // loop_exit
      _
    %2469 = vsyncpa [#allocation3], 1
    %s2470 = scalar_lea.sflag [#allocation3], 1
    %2471 = vsyncpa %s2470, 1

</llo_original>
